<compile_context>
chip_gen: v5e
topology: v5e:2x2
jax: 0.10.0
libtpu: 0.0.40
codegen_flags: <defaults>
</compile_context>

<pallas_src>
import functools

import jax
import jax.numpy as jnp
from jax.experimental import pallas as pl
from jax.experimental.pallas import tpu as pltpu

NUM_CLASSES = 10


def _round_up(x, m):
    return ((x + m - 1) // m) * m


def _pick_kn_tile(d):
    # d is already a multiple of 128 (weights are pre-padded at init)
    return 256 if d % 256 == 0 else 128


def _pick_m_tile(m):
    if m >= 512:
        return 512
    if m >= 256:
        return 256
    return _round_up(max(m, 16), 16)   # bf16 sublane packing => multiple of 16


# ----------------------------------------------------------------------------
# Pallas kernels
# ----------------------------------------------------------------------------
def _make_mm_kernel(act, has_residual):
    """matmul (bf16 in, f32 acc) + (scale, bias) affine + optional residual + activation."""

    def kernel(*refs):
        if has_residual:
            a_ref, b_ref, s_ref, c_ref, r_ref, o_ref = refs
        else:
            a_ref, b_ref, s_ref, c_ref, o_ref = refs
            r_ref = None
        k = pl.program_id(2)

        @pl.when(k == 0)
        def _():
            o_ref[...] = jnp.zeros_like(o_ref)

        # accumulate directly into the f32 output block (VMEM-resident across k)
        o_ref[...] += jnp.dot(a_ref[...], b_ref[...],
                              preferred_element_type=jnp.float32)

        @pl.when(k == pl.num_programs(2) - 1)
        def _():
            y = o_ref[...] * s_ref[...] + c_ref[...]
            if has_residual:
                y = y + r_ref[...]
            if act == "relu":
                y = jnp.maximum(y, 0.0)
            elif act == "leaky_relu":
                y = jnp.where(y >= 0.0, y, 0.01 * y)
            o_ref[...] = y

    return kernel


@functools.partial(jax.jit, static_argnames=("act", "has_residual", "n_out"))
def matmul_bn_act(a, b_p, s_p, c_p, residual=None, *, act=None,
                  has_residual=False, n_out=None):
    """out = act((a @ b) * scale + bias [+ residual]).

    a:   (M, K)  activations (any float dtype; cast to bf16 here)
    b_p: (Kp, Np) bf16 weights, pre-padded to multiples of 128
    s_p, c_p: (1, Np) f32 folded-BN scale / bias, pre-padded
    """
    M, K = a.shape
    Kp, Np = b_p.shape
    TK = _pick_kn_tile(Kp)
    TN = _pick_kn_tile(Np)
    TM = _pick_m_tile(M)
    Mp = _round_up(M, TM)

    a_p = jnp.pad(a.astype(jnp.bfloat16), ((0, Mp - M), (0, Kp - K)))

    inputs = [a_p, b_p, s_p, c_p]
    in_specs = [
        pl.BlockSpec((TM, TK), lambda n, m, k: (m, k)),
        pl.BlockSpec((TK, TN), lambda n, m, k: (k, n)),
        pl.BlockSpec((1, TN), lambda n, m, k: (0, n)),
        pl.BlockSpec((1, TN), lambda n, m, k: (0, n)),
    ]
    if has_residual:
        r_p = jnp.pad(residual.astype(jnp.float32),
                      ((0, Mp - M), (0, Np - residual.shape[1])))
        inputs.append(r_p)
        in_specs.append(pl.BlockSpec((TM, TN), lambda n, m, k: (m, n)))

    out = pl.pallas_call(
        _make_mm_kernel(act, has_residual),
        out_shape=jax.ShapeDtypeStruct((Mp, Np), jnp.float32),
        grid_spec=pltpu.PrefetchScalarGridSpec(
            num_scalar_prefetch=0,
            grid=(Np // TN, Mp // TM, Kp // TK),
            in_specs=in_specs,
            out_specs=pl.BlockSpec((TM, TN), lambda n, m, k: (m, n)),
        ),
        compiler_params=pltpu.CompilerParams(
            dimension_semantics=("parallel", "parallel", "arbitrary"),
            vmem_limit_bytes=32 * 1024 * 1024),
    )(*inputs)
    return out[:M, :n_out]


def _maxpool_kernel(x_ref, o_ref):
    m = x_ref[0]
    for i in range(1, 9):
        m = jnp.maximum(m, x_ref[i])
    o_ref[...] = m


def maxpool_3x3_s2_p1(x):
    """3x3 stride-2 pad-1 max pool, NHWC, gridded over row blocks (pipelined)."""
    B, H, W, C = x.shape
    k, s, pad = 3, 2, 1
    Ho = (H + 2 * pad - k) // s + 1
    Wo = (W + 2 * pad - k) // s + 1
    xp = jnp.pad(x, ((0, 0), (pad, pad), (pad, pad), (0, 0)),
                 constant_values=-jnp.inf)
    pats = [xp[:, i::s, j::s, :][:, :Ho, :Wo, :]
            for i in range(k) for j in range(k)]
    M = B * Ho * Wo
    stacked = jnp.stack(pats, axis=0).reshape(k * k, M, C)
    TR = min(512, _round_up(M, 8))
    Mp = _round_up(M, TR)
    stacked = jnp.pad(stacked, ((0, 0), (0, Mp - M), (0, 0)))

    out = pl.pallas_call(
        _maxpool_kernel,
        out_shape=jax.ShapeDtypeStruct((Mp, C), x.dtype),
        grid=(Mp // TR,),
        in_specs=[pl.BlockSpec((k * k, TR, C), lambda r: (0, r, 0))],
        out_specs=pl.BlockSpec((TR, C), lambda r: (r, 0)),
        compiler_params=pltpu.CompilerParams(
            dimension_semantics=("parallel",)),
    )(stacked)
    return out[:M].reshape(B, Ho, Wo, C)


def global_avgpool(x):
    """AdaptiveAvgPool2d((1,1)) + flatten, NHWC -> (B, C); gridded over batch."""
    B, H, W, C = x.shape
    hw = H * W
    inv = 1.0 / hw

    def kernel(x_ref, o_ref):
        o_ref[...] = jnp.sum(x_ref[...], axis=1, keepdims=True) * inv

    out = pl.pallas_call(
        kernel,
        out_shape=jax.ShapeDtypeStruct((B, 1, C), x.dtype),
        grid=(B,),
        in_specs=[pl.BlockSpec((1, hw, C), lambda b: (b, 0, 0))],
        out_specs=pl.BlockSpec((1, 1, C), lambda b: (b, 0, 0)),
        compiler_params=pltpu.CompilerParams(
            dimension_semantics=("parallel",)),
    )(x.reshape(B, hw, C))
    return out.reshape(B, C)


# ----------------------------------------------------------------------------
# Model glue (im2col, parameter plumbing) in plain JAX
# ----------------------------------------------------------------------------
def conv_bn_act(x, p, k, stride, pad, act, residual=None):
    """x: NHWC. p: {'w': (Kp,Np) bf16, 'scale'/'bias': (1,Np) f32, 'cout': int}."""
    B, H, W, C = x.shape
    Ho = (H + 2 * pad - k) // stride + 1
    Wo = (W + 2 * pad - k) // stride + 1
    if k == 1 and pad == 0:
        xs = x[:, ::stride, ::stride, :] if stride > 1 else x
        a = xs.reshape(B * Ho * Wo, C)
    else:
        xp = jnp.pad(x, ((0, 0), (pad, pad), (pad, pad), (0, 0)))
        xp = xp.astype(jnp.bfloat16)   # halve im2col HBM traffic
        cols = [xp[:, i::stride, j::stride, :][:, :Ho, :Wo, :]
                for i in range(k) for j in range(k)]
        a = jnp.concatenate(cols, axis=-1).reshape(B * Ho * Wo, k * k * C)
    cout = p["cout"]
    res = residual.reshape(B * Ho * Wo, cout) if residual is not None else None
    y = matmul_bn_act(a, p["w"], p["scale"], p["bias"], res,
                      act=act, has_residual=residual is not None, n_out=cout)
    return y.reshape(B, Ho, Wo, cout)


def linear(x, p, act):
    return matmul_bn_act(x, p["w"], p["scale"], p["bias"], None,
                         act=act, has_residual=False, n_out=p["n"])


def bottleneck_forward(x, p):
    s = p["stride"]
    identity = x
    out = conv_bn_act(x, p["conv1"], 1, 1, 0, "relu")
    out = conv_bn_act(out, p["conv2"], 3, s, 1, "relu")
    if "ds" in p:
        identity = conv_bn_act(x, p["ds"], 1, s, 0, None)
    out = conv_bn_act(out, p["conv3"], 1, 1, 0, "relu", residual=identity)
    return out


def resnet152_forward(x_nchw, params):
    x = jnp.transpose(x_nchw, (0, 2, 3, 1)).astype(jnp.float32)   # NCHW -> NHWC
    x = conv_bn_act(x, params["conv1"], 7, 2, 3, "relu")
    x = maxpool_3x3_s2_p1(x)
    for blks in params["layers"]:
        for p in blks:
            x = bottleneck_forward(x, p)
    x = global_avgpool(x)                          # (B, 2048)
    x = linear(x, params["fc1"], "leaky_relu")     # Linear(2048,1024) + LeakyReLU
    x = linear(x, params["fc2"], None)             # Linear(1024,num_classes)
    return x


# ----------------------------------------------------------------------------
# Deterministic synthetic parameter initialization (ResNet-152: blocks [3, 8, 36, 3]).
# Weights / folded BN are pre-padded to multiples of 128 and weights pre-cast to bf16.
# ----------------------------------------------------------------------------
def _bn_fold(key, c):
    k1, k2, k3, k4 = jax.random.split(key, 4)
    gamma = 0.5 + 0.05 * jax.random.normal(k1, (c,))
    beta = 0.05 * jax.random.normal(k2, (c,))
    mean = 0.05 * jax.random.normal(k3, (c,))
    var = 1.0 + 0.1 * jax.random.uniform(k4, (c,))
    scale = gamma / jnp.sqrt(var + 1e-5)
    bias = beta - mean * scale
    return scale.astype(jnp.float32), bias.astype(jnp.float32)


def _conv_bn_param(key, cin, cout, k):
    kw, kb = jax.random.split(key)
    K = k * k * cin
    std = (2.0 / K) ** 0.5
    w = std * jax.random.normal(kw, (K, cout))
    scale, bias = _bn_fold(kb, cout)
    Kp = _round_up(K, 128)
    Np = _round_up(cout, 128)
    return {
        "w": jnp.pad(w, ((0, Kp - K), (0, Np - cout))).astype(jnp.bfloat16),
        "scale": jnp.pad(scale, (0, Np - cout)).reshape(1, Np),
        "bias": jnp.pad(bias, (0, Np - cout)).reshape(1, Np),
        "cout": cout,
    }


def _fc_param(kw, kb, k_in, n_out):
    Kp = _round_up(k_in, 128)
    Np = _round_up(n_out, 128)
    std = 1.0 / k_in ** 0.5
    w = std * jax.random.normal(kw, (k_in, n_out))
    b = std * jax.random.normal(kb, (n_out,))
    return {
        "w": jnp.pad(w, ((0, Kp - k_in), (0, Np - n_out))).astype(jnp.bfloat16),
        "scale": jnp.pad(jnp.ones((n_out,), jnp.float32), (0, Np - n_out)).reshape(1, Np),
        "bias": jnp.pad(b.astype(jnp.float32), (0, Np - n_out)).reshape(1, Np),
        "n": n_out,
    }


def init_params(key, num_classes):
    keys = jax.random.split(key, 8)
    params = {"conv1": _conv_bn_param(keys[0], 3, 64, 7)}
    cfg = [(64, 3, 1), (128, 8, 2), (256, 36, 2), (512, 3, 2)]   # ResNet-152
    inplanes = 64
    layers = []
    for li, (planes, blocks, stride) in enumerate(cfg):
        bkeys = jax.random.split(keys[1 + li], blocks)
        blks = []
        for bi in range(blocks):
            s = stride if bi == 0 else 1
            need_ds = bi == 0 and (s != 1 or inplanes != planes * 4)
            ck = jax.random.split(bkeys[bi], 4)
            p = {
                "stride": s,
                "conv1": _conv_bn_param(ck[0], inplanes, planes, 1),
                "conv2": _conv_bn_param(ck[1], planes, planes, 3),
                "conv3": _conv_bn_param(ck[2], planes, planes * 4, 1),
            }
            if need_ds:
                p["ds"] = _conv_bn_param(ck[3], inplanes, planes * 4, 1)
            blks.append(p)
            inplanes = planes * 4
        layers.append(blks)
    params["layers"] = layers

    fk = jax.random.split(keys[6], 4)
    params["fc1"] = _fc_param(fk[0], fk[1], 2048, 1024)
    params["fc2"] = _fc_param(fk[2], fk[3], 1024, num_classes)
    return params


if __name__ == "__main__":
    key = jax.random.PRNGKey(0)
    pkey, xkey = jax.random.split(key)
    params = init_params(pkey, NUM_CLASSES)
    # Small NCHW image batch (PyTorch convention): batch=2, 3 channels, 32x32 spatial.
    x = jax.random.normal(xkey, (2, 3, 32, 32), dtype=jnp.float32)
    logits = resnet152_forward(x, params)
    logits = jax.block_until_ready(logits)
    assert logits.shape == (2, NUM_CLASSES), logits.shape
    assert bool(jnp.all(jnp.isfinite(logits)))
    print("KERNEL_OK")
</pallas_src>

<mosaic_0001>
module attributes {stable_mosaic.version = 11 : i64} {
  func.func @kernel(%arg0: i32, %arg1: i32, %arg2: i32, %arg3: memref<512x256xbf16, #tpu.memory_space<vmem>>, %arg4: memref<256x128xbf16, #tpu.memory_space<vmem>>, %arg5: memref<1x128xf32, #tpu.memory_space<vmem>>, %arg6: memref<1x128xf32, #tpu.memory_space<vmem>>, %arg7: memref<512x128xf32, #tpu.memory_space<vmem>>) attributes {dimension_semantics = [#tpu.dimension_semantics<parallel>, #tpu.dimension_semantics<parallel>, #tpu.dimension_semantics<arbitrary>], iteration_bounds = array<i64: 1, 1, 1>, scalar_prefetch = 0 : i64, scratch_operands = 0 : i64, tpu.core_type = #tpu.core_type<tc>, window_params = [{transform_indices = @transform_0, window_bounds = array<i64: 512, 256>}, {transform_indices = @transform_1, window_bounds = array<i64: 256, 128>}, {transform_indices = @transform_2, window_bounds = array<i64: 1, 128>}, {transform_indices = @transform_3, window_bounds = array<i64: 1, 128>}, {transform_indices = @transform_4, window_bounds = array<i64: 512, 128>}]} {
    %c0_i32 = arith.constant 0 : i32
    %0 = arith.cmpi eq, %arg2, %c0_i32 : i32
    %1 = arith.extui %0 : i1 to i32
    %c0_i32_0 = arith.constant 0 : i32
    %2 = arith.cmpi ne, %1, %c0_i32_0 : i32
    scf.if %2 {
      %cst_10 = arith.constant 0.000000e+00 : f32
      %12 = vector.broadcast %cst_10 : f32 to vector<512x128xf32>
      %c0_11 = arith.constant 0 : index
      %c0_12 = arith.constant 0 : index
      %13 = vector.load %arg7[%c0_11, %c0_12] : memref<512x128xf32, #tpu.memory_space<vmem>>, vector<512x128xf32>
      tpu.vector_store %arg7[%c0_11, %c0_12], %12 {strides = array<i32>} : memref<512x128xf32, #tpu.memory_space<vmem>>, vector<512x128xf32>,
    } else {
    }
    %c0 = arith.constant 0 : index
    %c0_1 = arith.constant 0 : index
    %3 = vector.load %arg7[%c0, %c0_1] : memref<512x128xf32, #tpu.memory_space<vmem>>, vector<512x128xf32>
    %c0_2 = arith.constant 0 : index
    %c0_3 = arith.constant 0 : index
    %4 = vector.load %arg3[%c0_2, %c0_3] : memref<512x256xbf16, #tpu.memory_space<vmem>>, vector<512x256xbf16>
    %c0_4 = arith.constant 0 : index
    %c0_5 = arith.constant 0 : index
    %5 = vector.load %arg4[%c0_4, %c0_5] : memref<256x128xbf16, #tpu.memory_space<vmem>>, vector<256x128xbf16>
    %cst = arith.constant dense<0.000000e+00> : vector<512x128xf32>
    %6 = tpu.matmul %4, %5, %cst {dimension_numbers = #tpu.dot_dimension_numbers<[1], [0], [0], [1], [0, 0, 1, 1], [], []>} : vector<512x256xbf16>, vector<256x128xbf16>, vector<512x128xf32> -> vector<512x128xf32>
    %7 = arith.addf %3, %6 : vector<512x128xf32>
    %c0_6 = arith.constant 0 : index
    %c0_7 = arith.constant 0 : index
    %8 = vector.load %arg7[%c0_6, %c0_7] : memref<512x128xf32, #tpu.memory_space<vmem>>, vector<512x128xf32>
    tpu.vector_store %arg7[%c0_6, %c0_7], %7 {strides = array<i32>} : memref<512x128xf32, #tpu.memory_space<vmem>>, vector<512x128xf32>,
    %c0_i32_8 = arith.constant 0 : i32
    %9 = arith.cmpi eq, %arg2, %c0_i32_8 : i32
    %10 = arith.extui %9 : i1 to i32
    %c0_i32_9 = arith.constant 0 : i32
    %11 = arith.cmpi ne, %10, %c0_i32_9 : i32
    scf.if %11 {
      %c0_10 = arith.constant 0 : index
      %c0_11 = arith.constant 0 : index
      %12 = vector.load %arg7[%c0_10, %c0_11] : memref<512x128xf32, #tpu.memory_space<vmem>>, vector<512x128xf32>
      %c0_12 = arith.constant 0 : index
      %c0_13 = arith.constant 0 : index
      %13 = vector.load %arg5[%c0_12, %c0_13] : memref<1x128xf32, #tpu.memory_space<vmem>>, vector<1x128xf32>
      %14 = vector.broadcast %13 : vector<1x128xf32> to vector<512x128xf32>
      %15 = arith.mulf %12, %14 : vector<512x128xf32>
      %c0_14 = arith.constant 0 : index
      %c0_15 = arith.constant 0 : index
      %16 = vector.load %arg6[%c0_14, %c0_15] : memref<1x128xf32, #tpu.memory_space<vmem>>, vector<1x128xf32>
      %17 = vector.broadcast %16 : vector<1x128xf32> to vector<512x128xf32>
      %18 = arith.addf %15, %17 : vector<512x128xf32>
      %cst_16 = arith.constant 0.000000e+00 : f32
      %19 = vector.broadcast %cst_16 : f32 to vector<512x128xf32>
      %20 = arith.maximumf %18, %19 : vector<512x128xf32>
      %c0_17 = arith.constant 0 : index
      %c0_18 = arith.constant 0 : index
      %21 = vector.load %arg7[%c0_17, %c0_18] : memref<512x128xf32, #tpu.memory_space<vmem>>, vector<512x128xf32>
      tpu.vector_store %arg7[%c0_17, %c0_18], %20 {strides = array<i32>} : memref<512x128xf32, #tpu.memory_space<vmem>>, vector<512x128xf32>,
    } else {
    }
    return
  }
  func.func @transform_0(%arg0: i32, %arg1: i32, %arg2: i32) -> (i32, i32) {
    %c0_i32 = arith.constant 0 : i32
    return %arg1, %arg2 : i32, i32
  }
  func.func @transform_1(%arg0: i32, %arg1: i32, %arg2: i32) -> (i32, i32) {
    %c0_i32 = arith.constant 0 : i32
    return %arg2, %arg0 : i32, i32
  }
  func.func @transform_2(%arg0: i32, %arg1: i32, %arg2: i32) -> (i32, i32) {
    %c0_i32 = arith.constant 0 : i32
    %c0_i32_0 = arith.constant 0 : i32
    return %c0_i32, %arg0 : i32, i32
  }
  func.func @transform_3(%arg0: i32, %arg1: i32, %arg2: i32) -> (i32, i32) {
    %c0_i32 = arith.constant 0 : i32
    %c0_i32_0 = arith.constant 0 : i32
    return %c0_i32, %arg0 : i32, i32
  }
  func.func @transform_4(%arg0: i32, %arg1: i32, %arg2: i32) -> (i32, i32) {
    %c0_i32 = arith.constant 0 : i32
    return %arg1, %arg0 : i32, i32
  }
}

</mosaic_0001>

<llo_original>
// kernel: matmul_bn_act.1
$region0: #{matmul_bn_act.1}
  #allocation0 [shape = 'u32[]', space=smem, size = 0x4, offset = 0x4, fixed_abs, tag = 'smem constant byte address 0x4 - core index']
  #allocation1 [shape = 'u32[72,128]{1,0:T(1,128)}', space=vmem, size = 0x9000, scoped, tag = 'internal scratch']
  %s0 = inlined_call_operand.vmem [shape: bf16[512,256], index: 0, kind: input, shape index: {}]
  %s1 = inlined_call_operand.vmem [shape: bf16[256,128], index: 1, kind: input, shape index: {}]
  %s2 = inlined_call_operand.vmem [shape: f32[1,128], index: 2, kind: input, shape index: {}]
  %s3 = inlined_call_operand.vmem [shape: f32[1,128], index: 3, kind: input, shape index: {}]
  %s4 = inlined_call_operand.vmem [shape: f32[512,128], index: 4, kind: output, shape index: {}]
  %s5 = sld [smem:[#allocation0]]
  $region34: #{matmul_bn_act.1} parent=0
    _
  %s7 = ssub.s32 1, %s5
  %s8 = scalar_select 0, %s7, %s5
  // Predicated region
  $region2: #{matmul_bn_act.1} parent=0 // pred_check
    _
  $region3: #{matmul_bn_act.1} parent=0 // pred_check_branch
    %10 = sbr.rel (0) target = $region5
  $region4: #{matmul_bn_act.1} parent=0 // pred_region
    _
  $region5: #{matmul_bn_act.1} parent=0 // pred_fallthru
    _
  // Predicated region
  $region6: #{matmul_bn_act.1} parent=0 // pred_check
    _
  $region7: #{matmul_bn_act.1} parent=0 // pred_check_branch
    %12 = sbr.rel (0) target = $region9
  $region8: #{matmul_bn_act.1} parent=0 // pred_region
    _
  $region9: #{matmul_bn_act.1} parent=0 // pred_fallthru
    _
  // Predicated region
  $region10: #{matmul_bn_act.1} parent=0 // pred_check
    _
  $region11: #{matmul_bn_act.1} parent=0 // pred_check_branch
    %14 = sbr.rel (0) target = $region13
  $region12: #{matmul_bn_act.1} parent=0 // pred_region
    _
  $region13: #{matmul_bn_act.1} parent=0 // pred_fallthru
    _
  // Predicated region
  $region14: #{matmul_bn_act.1} parent=0 // pred_check
    _
  $region15: #{matmul_bn_act.1} parent=0 // pred_check_branch
    %16 = sbr.rel (0) target = $region17
  $region16: #{matmul_bn_act.1} parent=0 // pred_region
    _
  $region17: #{matmul_bn_act.1} parent=0 // pred_fallthru
    _
  %p17 = scmp.eq.s32.totalorder 0, 0
  // Predicated region
  $region18: #{matmul_bn_act.1} parent=0 // pred_check
    %p18 = pneg %p17
  $region19: #{matmul_bn_act.1} parent=0 // pred_check_branch
    %20 = sbr.rel (%p18) target = $region21
  $region20: #{matmul_bn_act.1} parent=0 // pred_region
    %21 = vst [vmem:[%s4] sm:$0xff] 0.0
    %22 = vst [vmem:[%s4 + $0x8] sm:$0xff] 0.0
    %23 = vst [vmem:[%s4 + $0x10] sm:$0xff] 0.0
    %24 = vst [vmem:[%s4 + $0x18] sm:$0xff] 0.0
    %25 = vst [vmem:[%s4 + $0x20] sm:$0xff] 0.0
    %26 = vst [vmem:[%s4 + $0x28] sm:$0xff] 0.0
    %27 = vst [vmem:[%s4 + $0x30] sm:$0xff] 0.0
    %28 = vst [vmem:[%s4 + $0x38] sm:$0xff] 0.0
    %29 = vst [vmem:[%s4 + $0x40] sm:$0xff] 0.0
    %30 = vst [vmem:[%s4 + $0x48] sm:$0xff] 0.0
    %31 = vst [vmem:[%s4 + $0x50] sm:$0xff] 0.0
    %32 = vst [vmem:[%s4 + $0x58] sm:$0xff] 0.0
    %33 = vst [vmem:[%s4 + $0x60] sm:$0xff] 0.0
    %34 = vst [vmem:[%s4 + $0x68] sm:$0xff] 0.0
    %35 = vst [vmem:[%s4 + $0x70] sm:$0xff] 0.0
    %36 = vst [vmem:[%s4 + $0x78] sm:$0xff] 0.0
    %37 = vst [vmem:[%s4 + $0x80] sm:$0xff] 0.0
    %38 = vst [vmem:[%s4 + $0x88] sm:$0xff] 0.0
    %39 = vst [vmem:[%s4 + $0x90] sm:$0xff] 0.0
    %40 = vst [vmem:[%s4 + $0x98] sm:$0xff] 0.0
    %41 = vst [vmem:[%s4 + $0xa0] sm:$0xff] 0.0
    %42 = vst [vmem:[%s4 + $0xa8] sm:$0xff] 0.0
    %43 = vst [vmem:[%s4 + $0xb0] sm:$0xff] 0.0
    %44 = vst [vmem:[%s4 + $0xb8] sm:$0xff] 0.0
    %45 = vst [vmem:[%s4 + $0xc0] sm:$0xff] 0.0
    %46 = vst [vmem:[%s4 + $0xc8] sm:$0xff] 0.0
    %47 = vst [vmem:[%s4 + $0xd0] sm:$0xff] 0.0
    %48 = vst [vmem:[%s4 + $0xd8] sm:$0xff] 0.0
    %49 = vst [vmem:[%s4 + $0xe0] sm:$0xff] 0.0
    %50 = vst [vmem:[%s4 + $0xe8] sm:$0xff] 0.0
    %51 = vst [vmem:[%s4 + $0xf0] sm:$0xff] 0.0
    %52 = vst [vmem:[%s4 + $0xf8] sm:$0xff] 0.0
    %53 = vst [vmem:[%s4 + $0x100] sm:$0xff] 0.0
    %54 = vst [vmem:[%s4 + $0x108] sm:$0xff] 0.0
    %55 = vst [vmem:[%s4 + $0x110] sm:$0xff] 0.0
    %56 = vst [vmem:[%s4 + $0x118] sm:$0xff] 0.0
    %57 = vst [vmem:[%s4 + $0x120] sm:$0xff] 0.0
    %58 = vst [vmem:[%s4 + $0x128] sm:$0xff] 0.0
    %59 = vst [vmem:[%s4 + $0x130] sm:$0xff] 0.0
    %60 = vst [vmem:[%s4 + $0x138] sm:$0xff] 0.0
    %61 = vst [vmem:[%s4 + $0x140] sm:$0xff] 0.0
    %62 = vst [vmem:[%s4 + $0x148] sm:$0xff] 0.0
    %63 = vst [vmem:[%s4 + $0x150] sm:$0xff] 0.0
    %64 = vst [vmem:[%s4 + $0x158] sm:$0xff] 0.0
    %65 = vst [vmem:[%s4 + $0x160] sm:$0xff] 0.0
    %66 = vst [vmem:[%s4 + $0x168] sm:$0xff] 0.0
    %67 = vst [vmem:[%s4 + $0x170] sm:$0xff] 0.0
    %68 = vst [vmem:[%s4 + $0x178] sm:$0xff] 0.0
    %69 = vst [vmem:[%s4 + $0x180] sm:$0xff] 0.0
    %70 = vst [vmem:[%s4 + $0x188] sm:$0xff] 0.0
    %71 = vst [vmem:[%s4 + $0x190] sm:$0xff] 0.0
    %72 = vst [vmem:[%s4 + $0x198] sm:$0xff] 0.0
    %73 = vst [vmem:[%s4 + $0x1a0] sm:$0xff] 0.0
    %74 = vst [vmem:[%s4 + $0x1a8] sm:$0xff] 0.0
    %75 = vst [vmem:[%s4 + $0x1b0] sm:$0xff] 0.0
    %76 = vst [vmem:[%s4 + $0x1b8] sm:$0xff] 0.0
    %77 = vst [vmem:[%s4 + $0x1c0] sm:$0xff] 0.0
    %78 = vst [vmem:[%s4 + $0x1c8] sm:$0xff] 0.0
    %79 = vst [vmem:[%s4 + $0x1d0] sm:$0xff] 0.0
    %80 = vst [vmem:[%s4 + $0x1d8] sm:$0xff] 0.0
    %81 = vst [vmem:[%s4 + $0x1e0] sm:$0xff] 0.0
    %82 = vst [vmem:[%s4 + $0x1e8] sm:$0xff] 0.0
    %83 = vst [vmem:[%s4 + $0x1f0] sm:$0xff] 0.0
    %84 = vst [vmem:[%s4 + $0x1f8] sm:$0xff] 0.0
  $region21: #{matmul_bn_act.1} parent=0 // pred_fallthru
    _
  %v85 = vld [vmem:[%s4] sm:$0xff]
  %v86 = vld [vmem:[%s4 + $0x8] sm:$0xff]
  %v87 = vld [vmem:[%s4 + $0x10] sm:$0xff]
  %v88 = vld [vmem:[%s4 + $0x18] sm:$0xff]
  %v89 = vld [vmem:[%s4 + $0x20] sm:$0xff]
  %v90 = vld [vmem:[%s4 + $0x28] sm:$0xff]
  %v91 = vld [vmem:[%s4 + $0x30] sm:$0xff]
  %v92 = vld [vmem:[%s4 + $0x38] sm:$0xff]
  %v93 = vld [vmem:[%s4 + $0x40] sm:$0xff]
  %v94 = vld [vmem:[%s4 + $0x48] sm:$0xff]
  %v95 = vld [vmem:[%s4 + $0x50] sm:$0xff]
  %v96 = vld [vmem:[%s4 + $0x58] sm:$0xff]
  %v97 = vld [vmem:[%s4 + $0x60] sm:$0xff]
  %v98 = vld [vmem:[%s4 + $0x68] sm:$0xff]
  %v99 = vld [vmem:[%s4 + $0x70] sm:$0xff]
  %v100 = vld [vmem:[%s4 + $0x78] sm:$0xff]
  %v101 = vld [vmem:[%s4 + $0x80] sm:$0xff]
  %v102 = vld [vmem:[%s4 + $0x88] sm:$0xff]
  %v103 = vld [vmem:[%s4 + $0x90] sm:$0xff]
  %v104 = vld [vmem:[%s4 + $0x98] sm:$0xff]
  %v105 = vld [vmem:[%s4 + $0xa0] sm:$0xff]
  %v106 = vld [vmem:[%s4 + $0xa8] sm:$0xff]
  %v107 = vld [vmem:[%s4 + $0xb0] sm:$0xff]
  %v108 = vld [vmem:[%s4 + $0xb8] sm:$0xff]
  %v109 = vld [vmem:[%s4 + $0xc0] sm:$0xff]
  %v110 = vld [vmem:[%s4 + $0xc8] sm:$0xff]
  %v111 = vld [vmem:[%s4 + $0xd0] sm:$0xff]
  %v112 = vld [vmem:[%s4 + $0xd8] sm:$0xff]
  %v113 = vld [vmem:[%s4 + $0xe0] sm:$0xff]
  %v114 = vld [vmem:[%s4 + $0xe8] sm:$0xff]
  %v115 = vld [vmem:[%s4 + $0xf0] sm:$0xff]
  %v116 = vld [vmem:[%s4 + $0xf8] sm:$0xff]
  %v117 = vld [vmem:[%s4 + $0x100] sm:$0xff]
  %v118 = vld [vmem:[%s4 + $0x108] sm:$0xff]
  %v119 = vld [vmem:[%s4 + $0x110] sm:$0xff]
  %v120 = vld [vmem:[%s4 + $0x118] sm:$0xff]
  %v121 = vld [vmem:[%s4 + $0x120] sm:$0xff]
  %v122 = vld [vmem:[%s4 + $0x128] sm:$0xff]
  %v123 = vld [vmem:[%s4 + $0x130] sm:$0xff]
  %v124 = vld [vmem:[%s4 + $0x138] sm:$0xff]
  %v125 = vld [vmem:[%s4 + $0x140] sm:$0xff]
  %v126 = vld [vmem:[%s4 + $0x148] sm:$0xff]
  %v127 = vld [vmem:[%s4 + $0x150] sm:$0xff]
  %v128 = vld [vmem:[%s4 + $0x158] sm:$0xff]
  %v129 = vld [vmem:[%s4 + $0x160] sm:$0xff]
  %v130 = vld [vmem:[%s4 + $0x168] sm:$0xff]
  %v131 = vld [vmem:[%s4 + $0x170] sm:$0xff]
  %v132 = vld [vmem:[%s4 + $0x178] sm:$0xff]
  %v133 = vld [vmem:[%s4 + $0x180] sm:$0xff]
  %v134 = vld [vmem:[%s4 + $0x188] sm:$0xff]
  %v135 = vld [vmem:[%s4 + $0x190] sm:$0xff]
  %v136 = vld [vmem:[%s4 + $0x198] sm:$0xff]
  %v137 = vld [vmem:[%s4 + $0x1a0] sm:$0xff]
  %v138 = vld [vmem:[%s4 + $0x1a8] sm:$0xff]
  %v139 = vld [vmem:[%s4 + $0x1b0] sm:$0xff]
  %v140 = vld [vmem:[%s4 + $0x1b8] sm:$0xff]
  %v141 = vld [vmem:[%s4 + $0x1c0] sm:$0xff]
  %v142 = vld [vmem:[%s4 + $0x1c8] sm:$0xff]
  %v143 = vld [vmem:[%s4 + $0x1d0] sm:$0xff]
  %v144 = vld [vmem:[%s4 + $0x1d8] sm:$0xff]
  %v145 = vld [vmem:[%s4 + $0x1e0] sm:$0xff]
  %v146 = vld [vmem:[%s4 + $0x1e8] sm:$0xff]
  %v147 = vld [vmem:[%s4 + $0x1f0] sm:$0xff]
  %v148 = vld [vmem:[%s4 + $0x1f8] sm:$0xff]
  %v149 = vld [vmem:[%s0] sm:$0xff]
  %v150 = vld [vmem:[%s0 + $0x8] sm:$0xff]
  %v151 = vld [vmem:[%s0 + $0x10] sm:$0xff]
  %v152 = vld [vmem:[%s0 + $0x18] sm:$0xff]
  %v153 = vld [vmem:[%s0 + $0x20] sm:$0xff]
  %v154 = vld [vmem:[%s0 + $0x28] sm:$0xff]
  %v155 = vld [vmem:[%s0 + $0x30] sm:$0xff]
  %v156 = vld [vmem:[%s0 + $0x38] sm:$0xff]
  %v157 = vld [vmem:[%s0 + $0x40] sm:$0xff]
  %v158 = vld [vmem:[%s0 + $0x48] sm:$0xff]
  %v159 = vld [vmem:[%s0 + $0x50] sm:$0xff]
  %v160 = vld [vmem:[%s0 + $0x58] sm:$0xff]
  %v161 = vld [vmem:[%s0 + $0x60] sm:$0xff]
  %v162 = vld [vmem:[%s0 + $0x68] sm:$0xff]
  %v163 = vld [vmem:[%s0 + $0x70] sm:$0xff]
  %v164 = vld [vmem:[%s0 + $0x78] sm:$0xff]
  %v165 = vld [vmem:[%s0 + $0x80] sm:$0xff]
  %v166 = vld [vmem:[%s0 + $0x88] sm:$0xff]
  %v167 = vld [vmem:[%s0 + $0x90] sm:$0xff]
  %v168 = vld [vmem:[%s0 + $0x98] sm:$0xff]
  %v169 = vld [vmem:[%s0 + $0xa0] sm:$0xff]
  %v170 = vld [vmem:[%s0 + $0xa8] sm:$0xff]
  %v171 = vld [vmem:[%s0 + $0xb0] sm:$0xff]
  %v172 = vld [vmem:[%s0 + $0xb8] sm:$0xff]
  %v173 = vld [vmem:[%s0 + $0xc0] sm:$0xff]
  %v174 = vld [vmem:[%s0 + $0xc8] sm:$0xff]
  %v175 = vld [vmem:[%s0 + $0xd0] sm:$0xff]
  %v176 = vld [vmem:[%s0 + $0xd8] sm:$0xff]
  %v177 = vld [vmem:[%s0 + $0xe0] sm:$0xff]
  %v178 = vld [vmem:[%s0 + $0xe8] sm:$0xff]
  %v179 = vld [vmem:[%s0 + $0xf0] sm:$0xff]
  %v180 = vld [vmem:[%s0 + $0xf8] sm:$0xff]
  %v181 = vld [vmem:[%s0 + $0x100] sm:$0xff]
  %v182 = vld [vmem:[%s0 + $0x108] sm:$0xff]
  %v183 = vld [vmem:[%s0 + $0x110] sm:$0xff]
  %v184 = vld [vmem:[%s0 + $0x118] sm:$0xff]
  %v185 = vld [vmem:[%s0 + $0x120] sm:$0xff]
  %v186 = vld [vmem:[%s0 + $0x128] sm:$0xff]
  %v187 = vld [vmem:[%s0 + $0x130] sm:$0xff]
  %v188 = vld [vmem:[%s0 + $0x138] sm:$0xff]
  %v189 = vld [vmem:[%s0 + $0x140] sm:$0xff]
  %v190 = vld [vmem:[%s0 + $0x148] sm:$0xff]
  %v191 = vld [vmem:[%s0 + $0x150] sm:$0xff]
  %v192 = vld [vmem:[%s0 + $0x158] sm:$0xff]
  %v193 = vld [vmem:[%s0 + $0x160] sm:$0xff]
  %v194 = vld [vmem:[%s0 + $0x168] sm:$0xff]
  %v195 = vld [vmem:[%s0 + $0x170] sm:$0xff]
  %v196 = vld [vmem:[%s0 + $0x178] sm:$0xff]
  %v197 = vld [vmem:[%s0 + $0x180] sm:$0xff]
  %v198 = vld [vmem:[%s0 + $0x188] sm:$0xff]
  %v199 = vld [vmem:[%s0 + $0x190] sm:$0xff]
  %v200 = vld [vmem:[%s0 + $0x198] sm:$0xff]
  %v201 = vld [vmem:[%s0 + $0x1a0] sm:$0xff]
  %v202 = vld [vmem:[%s0 + $0x1a8] sm:$0xff]
  %v203 = vld [vmem:[%s0 + $0x1b0] sm:$0xff]
  %v204 = vld [vmem:[%s0 + $0x1b8] sm:$0xff]
  %v205 = vld [vmem:[%s0 + $0x1c0] sm:$0xff]
  %v206 = vld [vmem:[%s0 + $0x1c8] sm:$0xff]
  %v207 = vld [vmem:[%s0 + $0x1d0] sm:$0xff]
  %v208 = vld [vmem:[%s0 + $0x1d8] sm:$0xff]
  %v209 = vld [vmem:[%s0 + $0x1e0] sm:$0xff]
  %v210 = vld [vmem:[%s0 + $0x1e8] sm:$0xff]
  %v211 = vld [vmem:[%s0 + $0x1f0] sm:$0xff]
  %v212 = vld [vmem:[%s0 + $0x1f8] sm:$0xff]
  %v213 = vld [vmem:[%s1] sm:$0xf]
  %v214 = vld [vmem:[%s1 + $0x4] sm:$0xf]
  %v215 = vld [vmem:[%s1 + $0x8] sm:$0xf]
  %v216 = vld [vmem:[%s1 + $0xc] sm:$0xf]
  %v217 = vld [vmem:[%s1 + $0x10] sm:$0xf]
  %v218 = vld [vmem:[%s1 + $0x14] sm:$0xf]
  %v219 = vld [vmem:[%s1 + $0x18] sm:$0xf]
  %v220 = vld [vmem:[%s1 + $0x1c] sm:$0xf]
  %v221 = vld [vmem:[%s1 + $0x20] sm:$0xf]
  %v222 = vld [vmem:[%s1 + $0x24] sm:$0xf]
  %v223 = vld [vmem:[%s1 + $0x28] sm:$0xf]
  %v224 = vld [vmem:[%s1 + $0x2c] sm:$0xf]
  %v225 = vld [vmem:[%s1 + $0x30] sm:$0xf]
  %v226 = vld [vmem:[%s1 + $0x34] sm:$0xf]
  %v227 = vld [vmem:[%s1 + $0x38] sm:$0xf]
  %v228 = vld [vmem:[%s1 + $0x3c] sm:$0xf]
  %v229 = vld [vmem:[%s1 + $0x40] sm:$0xf]
  %v230 = vld [vmem:[%s1 + $0x44] sm:$0xf]
  %v231 = vld [vmem:[%s1 + $0x48] sm:$0xf]
  %v232 = vld [vmem:[%s1 + $0x4c] sm:$0xf]
  %v233 = vld [vmem:[%s1 + $0x50] sm:$0xf]
  %v234 = vld [vmem:[%s1 + $0x54] sm:$0xf]
  %v235 = vld [vmem:[%s1 + $0x58] sm:$0xf]
  %v236 = vld [vmem:[%s1 + $0x5c] sm:$0xf]
  %v237 = vld [vmem:[%s1 + $0x60] sm:$0xf]
  %v238 = vld [vmem:[%s1 + $0x64] sm:$0xf]
  %v239 = vld [vmem:[%s1 + $0x68] sm:$0xf]
  %v240 = vld [vmem:[%s1 + $0x6c] sm:$0xf]
  %v241 = vld [vmem:[%s1 + $0x70] sm:$0xf]
  %v242 = vld [vmem:[%s1 + $0x74] sm:$0xf]
  %v243 = vld [vmem:[%s1 + $0x78] sm:$0xf]
  %v244 = vld [vmem:[%s1 + $0x7c] sm:$0xf]
  %v309 = vunpack.c.l.b16 %v149
  %v310 = vunpack.c.h.b16 %v149
  %v311 = vunpack.c.l.b16 %v150
  %v312 = vunpack.c.h.b16 %v150
  %v313 = vunpack.c.l.b16 %v151
  %v314 = vunpack.c.h.b16 %v151
  %v315 = vunpack.c.l.b16 %v152
  %v316 = vunpack.c.h.b16 %v152
  %v317 = vunpack.c.l.b16 %v153
  %v318 = vunpack.c.h.b16 %v153
  %v319 = vunpack.c.l.b16 %v154
  %v320 = vunpack.c.h.b16 %v154
  %v321 = vunpack.c.l.b16 %v155
  %v322 = vunpack.c.h.b16 %v155
  %v323 = vunpack.c.l.b16 %v156
  %v324 = vunpack.c.h.b16 %v156
  %v325 = vunpack.c.l.b16 %v157
  %v326 = vunpack.c.h.b16 %v157
  %v327 = vunpack.c.l.b16 %v158
  %v328 = vunpack.c.h.b16 %v158
  %v329 = vunpack.c.l.b16 %v159
  %v330 = vunpack.c.h.b16 %v159
  %v331 = vunpack.c.l.b16 %v160
  %v332 = vunpack.c.h.b16 %v160
  %v333 = vunpack.c.l.b16 %v161
  %v334 = vunpack.c.h.b16 %v161
  %v335 = vunpack.c.l.b16 %v162
  %v336 = vunpack.c.h.b16 %v162
  %v337 = vunpack.c.l.b16 %v163
  %v338 = vunpack.c.h.b16 %v163
  %v339 = vunpack.c.l.b16 %v164
  %v340 = vunpack.c.h.b16 %v164
  %v341 = vunpack.c.l.b16 %v165
  %v342 = vunpack.c.h.b16 %v165
  %v343 = vunpack.c.l.b16 %v166
  %v344 = vunpack.c.h.b16 %v166
  %v345 = vunpack.c.l.b16 %v167
  %v346 = vunpack.c.h.b16 %v167
  %v347 = vunpack.c.l.b16 %v168
  %v348 = vunpack.c.h.b16 %v168
  %v349 = vunpack.c.l.b16 %v169
  %v350 = vunpack.c.h.b16 %v169
  %v351 = vunpack.c.l.b16 %v170
  %v352 = vunpack.c.h.b16 %v170
  %v353 = vunpack.c.l.b16 %v171
  %v354 = vunpack.c.h.b16 %v171
  %v355 = vunpack.c.l.b16 %v172
  %v356 = vunpack.c.h.b16 %v172
  %v357 = vunpack.c.l.b16 %v173
  %v358 = vunpack.c.h.b16 %v173
  %v359 = vunpack.c.l.b16 %v174
  %v360 = vunpack.c.h.b16 %v174
  %v361 = vunpack.c.l.b16 %v175
  %v362 = vunpack.c.h.b16 %v175
  %v363 = vunpack.c.l.b16 %v176
  %v364 = vunpack.c.h.b16 %v176
  %v365 = vunpack.c.l.b16 %v177
  %v366 = vunpack.c.h.b16 %v177
  %v367 = vunpack.c.l.b16 %v178
  %v368 = vunpack.c.h.b16 %v178
  %v369 = vunpack.c.l.b16 %v179
  %v370 = vunpack.c.h.b16 %v179
  %v371 = vunpack.c.l.b16 %v180
  %v372 = vunpack.c.h.b16 %v180
  %v373 = vunpack.c.l.b16 %v181
  %v374 = vunpack.c.h.b16 %v181
  %v375 = vunpack.c.l.b16 %v182
  %v376 = vunpack.c.h.b16 %v182
  %v377 = vunpack.c.l.b16 %v183
  %v378 = vunpack.c.h.b16 %v183
  %v379 = vunpack.c.l.b16 %v184
  %v380 = vunpack.c.h.b16 %v184
  %v381 = vunpack.c.l.b16 %v185
  %v382 = vunpack.c.h.b16 %v185
  %v383 = vunpack.c.l.b16 %v186
  %v384 = vunpack.c.h.b16 %v186
  %v385 = vunpack.c.l.b16 %v187
  %v386 = vunpack.c.h.b16 %v187
  %v387 = vunpack.c.l.b16 %v188
  %v388 = vunpack.c.h.b16 %v188
  %v389 = vunpack.c.l.b16 %v189
  %v390 = vunpack.c.h.b16 %v189
  %v391 = vunpack.c.l.b16 %v190
  %v392 = vunpack.c.h.b16 %v190
  %v393 = vunpack.c.l.b16 %v191
  %v394 = vunpack.c.h.b16 %v191
  %v395 = vunpack.c.l.b16 %v192
  %v396 = vunpack.c.h.b16 %v192
  %v397 = vunpack.c.l.b16 %v193
  %v398 = vunpack.c.h.b16 %v193
  %v399 = vunpack.c.l.b16 %v194
  %v400 = vunpack.c.h.b16 %v194
  %v401 = vunpack.c.l.b16 %v195
  %v402 = vunpack.c.h.b16 %v195
  %v403 = vunpack.c.l.b16 %v196
  %v404 = vunpack.c.h.b16 %v196
  %v405 = vunpack.c.l.b16 %v197
  %v406 = vunpack.c.h.b16 %v197
  %v407 = vunpack.c.l.b16 %v198
  %v408 = vunpack.c.h.b16 %v198
  %v409 = vunpack.c.l.b16 %v199
  %v410 = vunpack.c.h.b16 %v199
  %v411 = vunpack.c.l.b16 %v200
  %v412 = vunpack.c.h.b16 %v200
  %v413 = vunpack.c.l.b16 %v201
  %v414 = vunpack.c.h.b16 %v201
  %v415 = vunpack.c.l.b16 %v202
  %v416 = vunpack.c.h.b16 %v202
  %v417 = vunpack.c.l.b16 %v203
  %v418 = vunpack.c.h.b16 %v203
  %v419 = vunpack.c.l.b16 %v204
  %v420 = vunpack.c.h.b16 %v204
  %v421 = vunpack.c.l.b16 %v205
  %v422 = vunpack.c.h.b16 %v205
  %v423 = vunpack.c.l.b16 %v206
  %v424 = vunpack.c.h.b16 %v206
  %v425 = vunpack.c.l.b16 %v207
  %v426 = vunpack.c.h.b16 %v207
  %v427 = vunpack.c.l.b16 %v208
  %v428 = vunpack.c.h.b16 %v208
  %v429 = vunpack.c.l.b16 %v209
  %v430 = vunpack.c.h.b16 %v209
  %v431 = vunpack.c.l.b16 %v210
  %v432 = vunpack.c.h.b16 %v210
  %v433 = vunpack.c.l.b16 %v211
  %v434 = vunpack.c.h.b16 %v211
  %v435 = vunpack.c.l.b16 %v212
  %v436 = vunpack.c.h.b16 %v212
  %v437 = vpack.c.b16 %v311, %v309
  %v438 = vpack.c.b16 %v312, %v310
  %v439 = vpack.c.b16 %v315, %v313
  %v440 = vpack.c.b16 %v316, %v314
  %v441 = vpack.c.b16 %v319, %v317
  %v442 = vpack.c.b16 %v320, %v318
  %v443 = vpack.c.b16 %v323, %v321
  %v444 = vpack.c.b16 %v324, %v322
  %v445 = vpack.c.b16 %v327, %v325
  %v446 = vpack.c.b16 %v328, %v326
  %v447 = vpack.c.b16 %v331, %v329
  %v448 = vpack.c.b16 %v332, %v330
  %v449 = vpack.c.b16 %v335, %v333
  %v450 = vpack.c.b16 %v336, %v334
  %v451 = vpack.c.b16 %v339, %v337
  %v452 = vpack.c.b16 %v340, %v338
  %v453 = vpack.c.b16 %v343, %v341
  %v454 = vpack.c.b16 %v344, %v342
  %v455 = vpack.c.b16 %v347, %v345
  %v456 = vpack.c.b16 %v348, %v346
  %v457 = vpack.c.b16 %v351, %v349
  %v458 = vpack.c.b16 %v352, %v350
  %v459 = vpack.c.b16 %v355, %v353
  %v460 = vpack.c.b16 %v356, %v354
  %v461 = vpack.c.b16 %v359, %v357
  %v462 = vpack.c.b16 %v360, %v358
  %v463 = vpack.c.b16 %v363, %v361
  %v464 = vpack.c.b16 %v364, %v362
  %v465 = vpack.c.b16 %v367, %v365
  %v466 = vpack.c.b16 %v368, %v366
  %v467 = vpack.c.b16 %v371, %v369
  %v468 = vpack.c.b16 %v372, %v370
  %v469 = vpack.c.b16 %v375, %v373
  %v470 = vpack.c.b16 %v376, %v374
  %v471 = vpack.c.b16 %v379, %v377
  %v472 = vpack.c.b16 %v380, %v378
  %v473 = vpack.c.b16 %v383, %v381
  %v474 = vpack.c.b16 %v384, %v382
  %v475 = vpack.c.b16 %v387, %v385
  %v476 = vpack.c.b16 %v388, %v386
  %v477 = vpack.c.b16 %v391, %v389
  %v478 = vpack.c.b16 %v392, %v390
  %v479 = vpack.c.b16 %v395, %v393
  %v480 = vpack.c.b16 %v396, %v394
  %v481 = vpack.c.b16 %v399, %v397
  %v482 = vpack.c.b16 %v400, %v398
  %v483 = vpack.c.b16 %v403, %v401
  %v484 = vpack.c.b16 %v404, %v402
  %v485 = vpack.c.b16 %v407, %v405
  %v486 = vpack.c.b16 %v408, %v406
  %v487 = vpack.c.b16 %v411, %v409
  %v488 = vpack.c.b16 %v412, %v410
  %v489 = vpack.c.b16 %v415, %v413
  %v490 = vpack.c.b16 %v416, %v414
  %v491 = vpack.c.b16 %v419, %v417
  %v492 = vpack.c.b16 %v420, %v418
  %v493 = vpack.c.b16 %v423, %v421
  %v494 = vpack.c.b16 %v424, %v422
  %v495 = vpack.c.b16 %v427, %v425
  %v496 = vpack.c.b16 %v428, %v426
  %v497 = vpack.c.b16 %v431, %v429
  %v498 = vpack.c.b16 %v432, %v430
  %v499 = vpack.c.b16 %v435, %v433
  %v500 = vpack.c.b16 %v436, %v434
  %v597 = vunpack.c.l.b16 %v213
  %v598 = vunpack.c.l.b16 %v214
  %v599 = vunpack.c.l.b16 %v215
  %v600 = vunpack.c.l.b16 %v216
  %v601 = vunpack.c.l.b16 %v217
  %v602 = vunpack.c.l.b16 %v218
  %v603 = vunpack.c.l.b16 %v219
  %v604 = vunpack.c.l.b16 %v220
  %v605 = vunpack.c.l.b16 %v221
  %v606 = vunpack.c.l.b16 %v222
  %v607 = vunpack.c.l.b16 %v223
  %v608 = vunpack.c.l.b16 %v224
  %v609 = vunpack.c.l.b16 %v225
  %v610 = vunpack.c.l.b16 %v226
  %v611 = vunpack.c.l.b16 %v227
  %v612 = vunpack.c.l.b16 %v228
  %v613 = vunpack.c.l.b16 %v229
  %v614 = vunpack.c.l.b16 %v230
  %v615 = vunpack.c.l.b16 %v231
  %v616 = vunpack.c.l.b16 %v232
  %v617 = vunpack.c.l.b16 %v233
  %v618 = vunpack.c.l.b16 %v234
  %v619 = vunpack.c.l.b16 %v235
  %v620 = vunpack.c.l.b16 %v236
  %v621 = vunpack.c.l.b16 %v237
  %v622 = vunpack.c.l.b16 %v238
  %v623 = vunpack.c.l.b16 %v239
  %v624 = vunpack.c.l.b16 %v240
  %v625 = vunpack.c.l.b16 %v241
  %v626 = vunpack.c.l.b16 %v242
  %v627 = vunpack.c.l.b16 %v243
  %v628 = vunpack.c.l.b16 %v244
  %v629 = vpack.c.b16 %v598, %v597
  %v630 = vpack.c.b16 %v600, %v599
  %v631 = vpack.c.b16 %v602, %v601
  %v632 = vpack.c.b16 %v604, %v603
  %v633 = vpack.c.b16 %v606, %v605
  %v634 = vpack.c.b16 %v608, %v607
  %v635 = vpack.c.b16 %v610, %v609
  %v636 = vpack.c.b16 %v612, %v611
  %v637 = vpack.c.b16 %v614, %v613
  %v638 = vpack.c.b16 %v616, %v615
  %v639 = vpack.c.b16 %v618, %v617
  %v640 = vpack.c.b16 %v620, %v619
  %v641 = vpack.c.b16 %v622, %v621
  %v642 = vpack.c.b16 %v624, %v623
  %v643 = vpack.c.b16 %v626, %v625
  %v644 = vpack.c.b16 %v628, %v627
  %661 = vmatpush.bf16.msra.mxu0 %v636
  %662 = vmatpush.bf16.msra.mxu0 %v635
  %663 = vmatpush.bf16.msra.mxu0 %v634
  %664 = vmatpush.bf16.msra.mxu0 %v633
  %665 = vmatpush.bf16.msra.mxu0 %v632
  %666 = vmatpush.bf16.msra.mxu0 %v631
  %667 = vmatpush.bf16.msra.mxu0 %v630
  %668 = vmatpush.bf16.msra.mxu0 %v629
  %669 = vmatmul.bf16.gmra.mxu0 %v437
  %v670 = vpop.f32.mrf.mxu0
  %v671 = vadd.f32 0.0, %v670
  %v672 = vpop.f32.mrf.mxu0
  %v673 = vadd.f32 0.0, %v672
  %674 = vmatmul.bf16.gmra.mxu0 %v439
  %v675 = vpop.f32.mrf.mxu0
  %v676 = vadd.f32 0.0, %v675
  %v677 = vpop.f32.mrf.mxu0
  %v678 = vadd.f32 0.0, %v677
  %679 = vmatmul.bf16.gmra.mxu0 %v441
  %v680 = vpop.f32.mrf.mxu0
  %v681 = vadd.f32 0.0, %v680
  %v682 = vpop.f32.mrf.mxu0
  %v683 = vadd.f32 0.0, %v682
  %684 = vmatmul.bf16.gmra.mxu0 %v443
  %v685 = vpop.f32.mrf.mxu0
  %v686 = vadd.f32 0.0, %v685
  %v687 = vpop.f32.mrf.mxu0
  %v688 = vadd.f32 0.0, %v687
  %689 = vmatmul.bf16.gmra.mxu0 %v445
  %v690 = vpop.f32.mrf.mxu0
  %v691 = vadd.f32 0.0, %v690
  %v692 = vpop.f32.mrf.mxu0
  %v693 = vadd.f32 0.0, %v692
  %694 = vmatmul.bf16.gmra.mxu0 %v447
  %v695 = vpop.f32.mrf.mxu0
  %v696 = vadd.f32 0.0, %v695
  %v697 = vpop.f32.mrf.mxu0
  %v698 = vadd.f32 0.0, %v697
  %699 = vmatmul.bf16.gmra.mxu0 %v449
  %v700 = vpop.f32.mrf.mxu0
  %v701 = vadd.f32 0.0, %v700
  %v702 = vpop.f32.mrf.mxu0
  %v703 = vadd.f32 0.0, %v702
  %704 = vmatmul.bf16.gmra.mxu0 %v451
  %v705 = vpop.f32.mrf.mxu0
  %v706 = vadd.f32 0.0, %v705
  %v707 = vpop.f32.mrf.mxu0
  %v708 = vadd.f32 0.0, %v707
  %709 = vmatmul.bf16.gmra.mxu0 %v453
  %v710 = vpop.f32.mrf.mxu0
  %v711 = vadd.f32 0.0, %v710
  %v712 = vpop.f32.mrf.mxu0
  %v713 = vadd.f32 0.0, %v712
  %714 = vmatmul.bf16.gmra.mxu0 %v455
  %v715 = vpop.f32.mrf.mxu0
  %v716 = vadd.f32 0.0, %v715
  %v717 = vpop.f32.mrf.mxu0
  %v718 = vadd.f32 0.0, %v717
  %719 = vmatmul.bf16.gmra.mxu0 %v457
  %v720 = vpop.f32.mrf.mxu0
  %v721 = vadd.f32 0.0, %v720
  %v722 = vpop.f32.mrf.mxu0
  %v723 = vadd.f32 0.0, %v722
  %724 = vmatmul.bf16.gmra.mxu0 %v459
  %v725 = vpop.f32.mrf.mxu0
  %v726 = vadd.f32 0.0, %v725
  %v727 = vpop.f32.mrf.mxu0
  %v728 = vadd.f32 0.0, %v727
  %729 = vmatmul.bf16.gmra.mxu0 %v461
  %v730 = vpop.f32.mrf.mxu0
  %v731 = vadd.f32 0.0, %v730
  %v732 = vpop.f32.mrf.mxu0
  %v733 = vadd.f32 0.0, %v732
  %734 = vmatmul.bf16.gmra.mxu0 %v463
  %v735 = vpop.f32.mrf.mxu0
  %v736 = vadd.f32 0.0, %v735
  %v737 = vpop.f32.mrf.mxu0
  %v738 = vadd.f32 0.0, %v737
  %739 = vmatmul.bf16.gmra.mxu0 %v465
  %v740 = vpop.f32.mrf.mxu0
  %v741 = vadd.f32 0.0, %v740
  %v742 = vpop.f32.mrf.mxu0
  %v743 = vadd.f32 0.0, %v742
  %744 = vmatmul.bf16.gmra.mxu0 %v467
  %v745 = vpop.f32.mrf.mxu0
  %v746 = vadd.f32 0.0, %v745
  %v747 = vpop.f32.mrf.mxu0
  %v748 = vadd.f32 0.0, %v747
  %749 = vmatmul.bf16.gmra.mxu0 %v469
  %v750 = vpop.f32.mrf.mxu0
  %v751 = vadd.f32 0.0, %v750
  %v752 = vpop.f32.mrf.mxu0
  %v753 = vadd.f32 0.0, %v752
  %754 = vmatmul.bf16.gmra.mxu0 %v471
  %v755 = vpop.f32.mrf.mxu0
  %v756 = vadd.f32 0.0, %v755
  %v757 = vpop.f32.mrf.mxu0
  %v758 = vadd.f32 0.0, %v757
  %759 = vmatmul.bf16.gmra.mxu0 %v473
  %v760 = vpop.f32.mrf.mxu0
  %v761 = vadd.f32 0.0, %v760
  %v762 = vpop.f32.mrf.mxu0
  %v763 = vadd.f32 0.0, %v762
  %764 = vmatmul.bf16.gmra.mxu0 %v475
  %v765 = vpop.f32.mrf.mxu0
  %v766 = vadd.f32 0.0, %v765
  %v767 = vpop.f32.mrf.mxu0
  %v768 = vadd.f32 0.0, %v767
  %769 = vmatmul.bf16.gmra.mxu0 %v477
  %v770 = vpop.f32.mrf.mxu0
  %v771 = vadd.f32 0.0, %v770
  %v772 = vpop.f32.mrf.mxu0
  %v773 = vadd.f32 0.0, %v772
  %774 = vmatmul.bf16.gmra.mxu0 %v479
  %v775 = vpop.f32.mrf.mxu0
  %v776 = vadd.f32 0.0, %v775
  %v777 = vpop.f32.mrf.mxu0
  %v778 = vadd.f32 0.0, %v777
  %779 = vmatmul.bf16.gmra.mxu0 %v481
  %v780 = vpop.f32.mrf.mxu0
  %v781 = vadd.f32 0.0, %v780
  %v782 = vpop.f32.mrf.mxu0
  %v783 = vadd.f32 0.0, %v782
  %784 = vmatmul.bf16.gmra.mxu0 %v483
  %v785 = vpop.f32.mrf.mxu0
  %v786 = vadd.f32 0.0, %v785
  %v787 = vpop.f32.mrf.mxu0
  %v788 = vadd.f32 0.0, %v787
  %789 = vmatmul.bf16.gmra.mxu0 %v485
  %v790 = vpop.f32.mrf.mxu0
  %v791 = vadd.f32 0.0, %v790
  %v792 = vpop.f32.mrf.mxu0
  %v793 = vadd.f32 0.0, %v792
  %794 = vmatmul.bf16.gmra.mxu0 %v487
  %v795 = vpop.f32.mrf.mxu0
  %v796 = vadd.f32 0.0, %v795
  %v797 = vpop.f32.mrf.mxu0
  %v798 = vadd.f32 0.0, %v797
  %799 = vmatmul.bf16.gmra.mxu0 %v489
  %v800 = vpop.f32.mrf.mxu0
  %v801 = vadd.f32 0.0, %v800
  %v802 = vpop.f32.mrf.mxu0
  %v803 = vadd.f32 0.0, %v802
  %804 = vmatmul.bf16.gmra.mxu0 %v491
  %v805 = vpop.f32.mrf.mxu0
  %v806 = vadd.f32 0.0, %v805
  %v807 = vpop.f32.mrf.mxu0
  %v808 = vadd.f32 0.0, %v807
  %809 = vmatmul.bf16.gmra.mxu0 %v493
  %v810 = vpop.f32.mrf.mxu0
  %v811 = vadd.f32 0.0, %v810
  %v812 = vpop.f32.mrf.mxu0
  %v813 = vadd.f32 0.0, %v812
  %814 = vmatmul.bf16.gmra.mxu0 %v495
  %v815 = vpop.f32.mrf.mxu0
  %v816 = vadd.f32 0.0, %v815
  %v817 = vpop.f32.mrf.mxu0
  %v818 = vadd.f32 0.0, %v817
  %819 = vmatmul.bf16.gmra.mxu0 %v497
  %v820 = vpop.f32.mrf.mxu0
  %v821 = vadd.f32 0.0, %v820
  %v822 = vpop.f32.mrf.mxu0
  %v823 = vadd.f32 0.0, %v822
  %824 = vmatmul.bf16.gmra.mxu0 %v499
  %v825 = vpop.f32.mrf.mxu0
  %v826 = vadd.f32 0.0, %v825
  %v827 = vpop.f32.mrf.mxu0
  %v828 = vadd.f32 0.0, %v827
  %829 = vdwg.mxu0
  %830 = vmatpush.bf16.msra.mxu0 %v644
  %831 = vmatpush.bf16.msra.mxu0 %v643
  %832 = vmatpush.bf16.msra.mxu0 %v642
  %833 = vmatpush.bf16.msra.mxu0 %v641
  %834 = vmatpush.bf16.msra.mxu0 %v640
  %835 = vmatpush.bf16.msra.mxu0 %v639
  %836 = vmatpush.bf16.msra.mxu0 %v638
  %837 = vmatpush.bf16.msra.mxu0 %v637
  %838 = vmatmul.bf16.gmra.mxu0 %v438
  %v839 = vpop.f32.mrf.mxu0
  %v840 = vadd.f32 %v671, %v839
  %v841 = vpop.f32.mrf.mxu0
  %v842 = vadd.f32 %v673, %v841
  %843 = vmatmul.bf16.gmra.mxu0 %v440
  %v844 = vpop.f32.mrf.mxu0
  %v845 = vadd.f32 %v676, %v844
  %v846 = vpop.f32.mrf.mxu0
  %v847 = vadd.f32 %v678, %v846
  %848 = vmatmul.bf16.gmra.mxu0 %v442
  %v849 = vpop.f32.mrf.mxu0
  %v850 = vadd.f32 %v681, %v849
  %v851 = vpop.f32.mrf.mxu0
  %v852 = vadd.f32 %v683, %v851
  %853 = vmatmul.bf16.gmra.mxu0 %v444
  %v854 = vpop.f32.mrf.mxu0
  %v855 = vadd.f32 %v686, %v854
  %v856 = vpop.f32.mrf.mxu0
  %v857 = vadd.f32 %v688, %v856
  %858 = vmatmul.bf16.gmra.mxu0 %v446
  %v859 = vpop.f32.mrf.mxu0
  %v860 = vadd.f32 %v691, %v859
  %v861 = vpop.f32.mrf.mxu0
  %v862 = vadd.f32 %v693, %v861
  %863 = vmatmul.bf16.gmra.mxu0 %v448
  %v864 = vpop.f32.mrf.mxu0
  %v865 = vadd.f32 %v696, %v864
  %v866 = vpop.f32.mrf.mxu0
  %v867 = vadd.f32 %v698, %v866
  %868 = vmatmul.bf16.gmra.mxu0 %v450
  %v869 = vpop.f32.mrf.mxu0
  %v870 = vadd.f32 %v701, %v869
  %v871 = vpop.f32.mrf.mxu0
  %v872 = vadd.f32 %v703, %v871
  %873 = vmatmul.bf16.gmra.mxu0 %v452
  %v874 = vpop.f32.mrf.mxu0
  %v875 = vadd.f32 %v706, %v874
  %v876 = vpop.f32.mrf.mxu0
  %v877 = vadd.f32 %v708, %v876
  %878 = vmatmul.bf16.gmra.mxu0 %v454
  %v879 = vpop.f32.mrf.mxu0
  %v880 = vadd.f32 %v711, %v879
  %v881 = vpop.f32.mrf.mxu0
  %v882 = vadd.f32 %v713, %v881
  %883 = vmatmul.bf16.gmra.mxu0 %v456
  %v884 = vpop.f32.mrf.mxu0
  %v885 = vadd.f32 %v716, %v884
  %v886 = vpop.f32.mrf.mxu0
  %v887 = vadd.f32 %v718, %v886
  %888 = vmatmul.bf16.gmra.mxu0 %v458
  %v889 = vpop.f32.mrf.mxu0
  %v890 = vadd.f32 %v721, %v889
  %v891 = vpop.f32.mrf.mxu0
  %v892 = vadd.f32 %v723, %v891
  %893 = vmatmul.bf16.gmra.mxu0 %v460
  %v894 = vpop.f32.mrf.mxu0
  %v895 = vadd.f32 %v726, %v894
  %v896 = vpop.f32.mrf.mxu0
  %v897 = vadd.f32 %v728, %v896
  %898 = vmatmul.bf16.gmra.mxu0 %v462
  %v899 = vpop.f32.mrf.mxu0
  %v900 = vadd.f32 %v731, %v899
  %v901 = vpop.f32.mrf.mxu0
  %v902 = vadd.f32 %v733, %v901
  %903 = vmatmul.bf16.gmra.mxu0 %v464
  %v904 = vpop.f32.mrf.mxu0
  %v905 = vadd.f32 %v736, %v904
  %v906 = vpop.f32.mrf.mxu0
  %v907 = vadd.f32 %v738, %v906
  %908 = vmatmul.bf16.gmra.mxu0 %v466
  %v909 = vpop.f32.mrf.mxu0
  %v910 = vadd.f32 %v741, %v909
  %v911 = vpop.f32.mrf.mxu0
  %v912 = vadd.f32 %v743, %v911
  %913 = vmatmul.bf16.gmra.mxu0 %v468
  %v914 = vpop.f32.mrf.mxu0
  %v915 = vadd.f32 %v746, %v914
  %v916 = vpop.f32.mrf.mxu0
  %v917 = vadd.f32 %v748, %v916
  %918 = vmatmul.bf16.gmra.mxu0 %v470
  %v919 = vpop.f32.mrf.mxu0
  %v920 = vadd.f32 %v751, %v919
  %v921 = vpop.f32.mrf.mxu0
  %v922 = vadd.f32 %v753, %v921
  %923 = vmatmul.bf16.gmra.mxu0 %v472
  %v924 = vpop.f32.mrf.mxu0
  %v925 = vadd.f32 %v756, %v924
  %v926 = vpop.f32.mrf.mxu0
  %v927 = vadd.f32 %v758, %v926
  %928 = vmatmul.bf16.gmra.mxu0 %v474
  %v929 = vpop.f32.mrf.mxu0
  %v930 = vadd.f32 %v761, %v929
  %v931 = vpop.f32.mrf.mxu0
  %v932 = vadd.f32 %v763, %v931
  %933 = vmatmul.bf16.gmra.mxu0 %v476
  %v934 = vpop.f32.mrf.mxu0
  %v935 = vadd.f32 %v766, %v934
  %v936 = vpop.f32.mrf.mxu0
  %v937 = vadd.f32 %v768, %v936
  %938 = vmatmul.bf16.gmra.mxu0 %v478
  %v939 = vpop.f32.mrf.mxu0
  %v940 = vadd.f32 %v771, %v939
  %v941 = vpop.f32.mrf.mxu0
  %v942 = vadd.f32 %v773, %v941
  %943 = vmatmul.bf16.gmra.mxu0 %v480
  %v944 = vpop.f32.mrf.mxu0
  %v945 = vadd.f32 %v776, %v944
  %v946 = vpop.f32.mrf.mxu0
  %v947 = vadd.f32 %v778, %v946
  %948 = vmatmul.bf16.gmra.mxu0 %v482
  %v949 = vpop.f32.mrf.mxu0
  %v950 = vadd.f32 %v781, %v949
  %v951 = vpop.f32.mrf.mxu0
  %v952 = vadd.f32 %v783, %v951
  %953 = vmatmul.bf16.gmra.mxu0 %v484
  %v954 = vpop.f32.mrf.mxu0
  %v955 = vadd.f32 %v786, %v954
  %v956 = vpop.f32.mrf.mxu0
  %v957 = vadd.f32 %v788, %v956
  %958 = vmatmul.bf16.gmra.mxu0 %v486
  %v959 = vpop.f32.mrf.mxu0
  %v960 = vadd.f32 %v791, %v959
  %v961 = vpop.f32.mrf.mxu0
  %v962 = vadd.f32 %v793, %v961
  %963 = vmatmul.bf16.gmra.mxu0 %v488
  %v964 = vpop.f32.mrf.mxu0
  %v965 = vadd.f32 %v796, %v964
  %v966 = vpop.f32.mrf.mxu0
  %v967 = vadd.f32 %v798, %v966
  %968 = vmatmul.bf16.gmra.mxu0 %v490
  %v969 = vpop.f32.mrf.mxu0
  %v970 = vadd.f32 %v801, %v969
  %v971 = vpop.f32.mrf.mxu0
  %v972 = vadd.f32 %v803, %v971
  %973 = vmatmul.bf16.gmra.mxu0 %v492
  %v974 = vpop.f32.mrf.mxu0
  %v975 = vadd.f32 %v806, %v974
  %v976 = vpop.f32.mrf.mxu0
  %v977 = vadd.f32 %v808, %v976
  %978 = vmatmul.bf16.gmra.mxu0 %v494
  %v979 = vpop.f32.mrf.mxu0
  %v980 = vadd.f32 %v811, %v979
  %v981 = vpop.f32.mrf.mxu0
  %v982 = vadd.f32 %v813, %v981
  %983 = vmatmul.bf16.gmra.mxu0 %v496
  %v984 = vpop.f32.mrf.mxu0
  %v985 = vadd.f32 %v816, %v984
  %v986 = vpop.f32.mrf.mxu0
  %v987 = vadd.f32 %v818, %v986
  %988 = vmatmul.bf16.gmra.mxu0 %v498
  %v989 = vpop.f32.mrf.mxu0
  %v990 = vadd.f32 %v821, %v989
  %v991 = vpop.f32.mrf.mxu0
  %v992 = vadd.f32 %v823, %v991
  %993 = vmatmul.bf16.gmra.mxu0 %v500
  %v994 = vpop.f32.mrf.mxu0
  %v995 = vadd.f32 %v826, %v994
  %v996 = vpop.f32.mrf.mxu0
  %v997 = vadd.f32 %v828, %v996
  %998 = vdwg.mxu0
  %v999 = vadd.f32 %v85, %v840
  %v1000 = vadd.f32 %v86, %v842
  %v1001 = vadd.f32 %v87, %v845
  %v1002 = vadd.f32 %v88, %v847
  %v1003 = vadd.f32 %v89, %v850
  %v1004 = vadd.f32 %v90, %v852
  %v1005 = vadd.f32 %v91, %v855
  %v1006 = vadd.f32 %v92, %v857
  %v1007 = vadd.f32 %v93, %v860
  %v1008 = vadd.f32 %v94, %v862
  %v1009 = vadd.f32 %v95, %v865
  %v1010 = vadd.f32 %v96, %v867
  %v1011 = vadd.f32 %v97, %v870
  %v1012 = vadd.f32 %v98, %v872
  %v1013 = vadd.f32 %v99, %v875
  %v1014 = vadd.f32 %v100, %v877
  %v1015 = vadd.f32 %v101, %v880
  %v1016 = vadd.f32 %v102, %v882
  %v1017 = vadd.f32 %v103, %v885
  %v1018 = vadd.f32 %v104, %v887
  %v1019 = vadd.f32 %v105, %v890
  %v1020 = vadd.f32 %v106, %v892
  %v1021 = vadd.f32 %v107, %v895
  %v1022 = vadd.f32 %v108, %v897
  %v1023 = vadd.f32 %v109, %v900
  %v1024 = vadd.f32 %v110, %v902
  %v1025 = vadd.f32 %v111, %v905
  %v1026 = vadd.f32 %v112, %v907
  %v1027 = vadd.f32 %v113, %v910
  %v1028 = vadd.f32 %v114, %v912
  %v1029 = vadd.f32 %v115, %v915
  %v1030 = vadd.f32 %v116, %v917
  %v1031 = vadd.f32 %v117, %v920
  %v1032 = vadd.f32 %v118, %v922
  %v1033 = vadd.f32 %v119, %v925
  %v1034 = vadd.f32 %v120, %v927
  %v1035 = vadd.f32 %v121, %v930
  %v1036 = vadd.f32 %v122, %v932
  %v1037 = vadd.f32 %v123, %v935
  %v1038 = vadd.f32 %v124, %v937
  %v1039 = vadd.f32 %v125, %v940
  %v1040 = vadd.f32 %v126, %v942
  %v1041 = vadd.f32 %v127, %v945
  %v1042 = vadd.f32 %v128, %v947
  %v1043 = vadd.f32 %v129, %v950
  %v1044 = vadd.f32 %v130, %v952
  %v1045 = vadd.f32 %v131, %v955
  %v1046 = vadd.f32 %v132, %v957
  %v1047 = vadd.f32 %v133, %v960
  %v1048 = vadd.f32 %v134, %v962
  %v1049 = vadd.f32 %v135, %v965
  %v1050 = vadd.f32 %v136, %v967
  %v1051 = vadd.f32 %v137, %v970
  %v1052 = vadd.f32 %v138, %v972
  %v1053 = vadd.f32 %v139, %v975
  %v1054 = vadd.f32 %v140, %v977
  %v1055 = vadd.f32 %v141, %v980
  %v1056 = vadd.f32 %v142, %v982
  %v1057 = vadd.f32 %v143, %v985
  %v1058 = vadd.f32 %v144, %v987
  %v1059 = vadd.f32 %v145, %v990
  %v1060 = vadd.f32 %v146, %v992
  %v1061 = vadd.f32 %v147, %v995
  %v1062 = vadd.f32 %v148, %v997
  %1063 = vst [vmem:[%s4] sm:$0xff] %v999
  %1064 = vst [vmem:[%s4 + $0x8] sm:$0xff] %v1000
  %1065 = vst [vmem:[%s4 + $0x10] sm:$0xff] %v1001
  %1066 = vst [vmem:[%s4 + $0x18] sm:$0xff] %v1002
  %1067 = vst [vmem:[%s4 + $0x20] sm:$0xff] %v1003
  %1068 = vst [vmem:[%s4 + $0x28] sm:$0xff] %v1004
  %1069 = vst [vmem:[%s4 + $0x30] sm:$0xff] %v1005
  %1070 = vst [vmem:[%s4 + $0x38] sm:$0xff] %v1006
  %1071 = vst [vmem:[%s4 + $0x40] sm:$0xff] %v1007
  %1072 = vst [vmem:[%s4 + $0x48] sm:$0xff] %v1008
  %1073 = vst [vmem:[%s4 + $0x50] sm:$0xff] %v1009
  %1074 = vst [vmem:[%s4 + $0x58] sm:$0xff] %v1010
  %1075 = vst [vmem:[%s4 + $0x60] sm:$0xff] %v1011
  %1076 = vst [vmem:[%s4 + $0x68] sm:$0xff] %v1012
  %1077 = vst [vmem:[%s4 + $0x70] sm:$0xff] %v1013
  %1078 = vst [vmem:[%s4 + $0x78] sm:$0xff] %v1014
  %1079 = vst [vmem:[%s4 + $0x80] sm:$0xff] %v1015
  %1080 = vst [vmem:[%s4 + $0x88] sm:$0xff] %v1016
  %1081 = vst [vmem:[%s4 + $0x90] sm:$0xff] %v1017
  %1082 = vst [vmem:[%s4 + $0x98] sm:$0xff] %v1018
  %1083 = vst [vmem:[%s4 + $0xa0] sm:$0xff] %v1019
  %1084 = vst [vmem:[%s4 + $0xa8] sm:$0xff] %v1020
  %1085 = vst [vmem:[%s4 + $0xb0] sm:$0xff] %v1021
  %1086 = vst [vmem:[%s4 + $0xb8] sm:$0xff] %v1022
  %1087 = vst [vmem:[%s4 + $0xc0] sm:$0xff] %v1023
  %1088 = vst [vmem:[%s4 + $0xc8] sm:$0xff] %v1024
  %1089 = vst [vmem:[%s4 + $0xd0] sm:$0xff] %v1025
  %1090 = vst [vmem:[%s4 + $0xd8] sm:$0xff] %v1026
  %1091 = vst [vmem:[%s4 + $0xe0] sm:$0xff] %v1027
  %1092 = vst [vmem:[%s4 + $0xe8] sm:$0xff] %v1028
  %1093 = vst [vmem:[%s4 + $0xf0] sm:$0xff] %v1029
  %1094 = vst [vmem:[%s4 + $0xf8] sm:$0xff] %v1030
  %1095 = vst [vmem:[%s4 + $0x100] sm:$0xff] %v1031
  %1096 = vst [vmem:[%s4 + $0x108] sm:$0xff] %v1032
  %1097 = vst [vmem:[%s4 + $0x110] sm:$0xff] %v1033
  %1098 = vst [vmem:[%s4 + $0x118] sm:$0xff] %v1034
  %1099 = vst [vmem:[%s4 + $0x120] sm:$0xff] %v1035
  %1100 = vst [vmem:[%s4 + $0x128] sm:$0xff] %v1036
  %1101 = vst [vmem:[%s4 + $0x130] sm:$0xff] %v1037
  %1102 = vst [vmem:[%s4 + $0x138] sm:$0xff] %v1038
  %1103 = vst [vmem:[%s4 + $0x140] sm:$0xff] %v1039
  %1104 = vst [vmem:[%s4 + $0x148] sm:$0xff] %v1040
  %1105 = vst [vmem:[%s4 + $0x150] sm:$0xff] %v1041
  %1106 = vst [vmem:[%s4 + $0x158] sm:$0xff] %v1042
  %1107 = vst [vmem:[%s4 + $0x160] sm:$0xff] %v1043
  %1108 = vst [vmem:[%s4 + $0x168] sm:$0xff] %v1044
  %1109 = vst [vmem:[%s4 + $0x170] sm:$0xff] %v1045
  %1110 = vst [vmem:[%s4 + $0x178] sm:$0xff] %v1046
  %1111 = vst [vmem:[%s4 + $0x180] sm:$0xff] %v1047
  %1112 = vst [vmem:[%s4 + $0x188] sm:$0xff] %v1048
  %1113 = vst [vmem:[%s4 + $0x190] sm:$0xff] %v1049
  %1114 = vst [vmem:[%s4 + $0x198] sm:$0xff] %v1050
  %1115 = vst [vmem:[%s4 + $0x1a0] sm:$0xff] %v1051
  %1116 = vst [vmem:[%s4 + $0x1a8] sm:$0xff] %v1052
  %1117 = vst [vmem:[%s4 + $0x1b0] sm:$0xff] %v1053
  %1118 = vst [vmem:[%s4 + $0x1b8] sm:$0xff] %v1054
  %1119 = vst [vmem:[%s4 + $0x1c0] sm:$0xff] %v1055
  %1120 = vst [vmem:[%s4 + $0x1c8] sm:$0xff] %v1056
  %1121 = vst [vmem:[%s4 + $0x1d0] sm:$0xff] %v1057
  %1122 = vst [vmem:[%s4 + $0x1d8] sm:$0xff] %v1058
  %1123 = vst [vmem:[%s4 + $0x1e0] sm:$0xff] %v1059
  %1124 = vst [vmem:[%s4 + $0x1e8] sm:$0xff] %v1060
  %1125 = vst [vmem:[%s4 + $0x1f0] sm:$0xff] %v1061
  %1126 = vst [vmem:[%s4 + $0x1f8] sm:$0xff] %v1062
  // Predicated region
  $region22: #{matmul_bn_act.1} parent=0 // pred_check
    %p1127 = pneg %p17
  $region23: #{matmul_bn_act.1} parent=0 // pred_check_branch
    %1129 = sbr.rel (%p1127) target = $region25
  $region24: #{matmul_bn_act.1} parent=0 // pred_region
    %v1130 = vld [vmem:[%s4] sm:$0xff]
    %v1131 = vld [vmem:[%s4 + $0x8] sm:$0xff]
    %v1132 = vld [vmem:[%s4 + $0x10] sm:$0xff]
    %v1133 = vld [vmem:[%s4 + $0x18] sm:$0xff]
    %v1134 = vld [vmem:[%s4 + $0x20] sm:$0xff]
    %v1135 = vld [vmem:[%s4 + $0x28] sm:$0xff]
    %v1136 = vld [vmem:[%s4 + $0x30] sm:$0xff]
    %v1137 = vld [vmem:[%s4 + $0x38] sm:$0xff]
    %v1138 = vld [vmem:[%s4 + $0x40] sm:$0xff]
    %v1139 = vld [vmem:[%s4 + $0x48] sm:$0xff]
    %v1140 = vld [vmem:[%s4 + $0x50] sm:$0xff]
    %v1141 = vld [vmem:[%s4 + $0x58] sm:$0xff]
    %v1142 = vld [vmem:[%s4 + $0x60] sm:$0xff]
    %v1143 = vld [vmem:[%s4 + $0x68] sm:$0xff]
    %v1144 = vld [vmem:[%s4 + $0x70] sm:$0xff]
    %v1145 = vld [vmem:[%s4 + $0x78] sm:$0xff]
    %v1146 = vld [vmem:[%s4 + $0x80] sm:$0xff]
    %v1147 = vld [vmem:[%s4 + $0x88] sm:$0xff]
    %v1148 = vld [vmem:[%s4 + $0x90] sm:$0xff]
    %v1149 = vld [vmem:[%s4 + $0x98] sm:$0xff]
    %v1150 = vld [vmem:[%s4 + $0xa0] sm:$0xff]
    %v1151 = vld [vmem:[%s4 + $0xa8] sm:$0xff]
    %v1152 = vld [vmem:[%s4 + $0xb0] sm:$0xff]
    %v1153 = vld [vmem:[%s4 + $0xb8] sm:$0xff]
    %v1154 = vld [vmem:[%s4 + $0xc0] sm:$0xff]
    %v1155 = vld [vmem:[%s4 + $0xc8] sm:$0xff]
    %v1156 = vld [vmem:[%s4 + $0xd0] sm:$0xff]
    %v1157 = vld [vmem:[%s4 + $0xd8] sm:$0xff]
    %v1158 = vld [vmem:[%s4 + $0xe0] sm:$0xff]
    %v1159 = vld [vmem:[%s4 + $0xe8] sm:$0xff]
    %v1160 = vld [vmem:[%s4 + $0xf0] sm:$0xff]
    %v1161 = vld [vmem:[%s4 + $0xf8] sm:$0xff]
    %v1162 = vld [vmem:[%s4 + $0x100] sm:$0xff]
    %v1163 = vld [vmem:[%s4 + $0x108] sm:$0xff]
    %v1164 = vld [vmem:[%s4 + $0x110] sm:$0xff]
    %v1165 = vld [vmem:[%s4 + $0x118] sm:$0xff]
    %v1166 = vld [vmem:[%s4 + $0x120] sm:$0xff]
    %v1167 = vld [vmem:[%s4 + $0x128] sm:$0xff]
    %v1168 = vld [vmem:[%s4 + $0x130] sm:$0xff]
    %v1169 = vld [vmem:[%s4 + $0x138] sm:$0xff]
    %v1170 = vld [vmem:[%s4 + $0x140] sm:$0xff]
    %v1171 = vld [vmem:[%s4 + $0x148] sm:$0xff]
    %v1172 = vld [vmem:[%s4 + $0x150] sm:$0xff]
    %v1173 = vld [vmem:[%s4 + $0x158] sm:$0xff]
    %v1174 = vld [vmem:[%s4 + $0x160] sm:$0xff]
    %v1175 = vld [vmem:[%s4 + $0x168] sm:$0xff]
    %v1176 = vld [vmem:[%s4 + $0x170] sm:$0xff]
    %v1177 = vld [vmem:[%s4 + $0x178] sm:$0xff]
    %v1178 = vld [vmem:[%s4 + $0x180] sm:$0xff]
    %v1179 = vld [vmem:[%s4 + $0x188] sm:$0xff]
    %v1180 = vld [vmem:[%s4 + $0x190] sm:$0xff]
    %v1181 = vld [vmem:[%s4 + $0x198] sm:$0xff]
    %v1182 = vld [vmem:[%s4 + $0x1a0] sm:$0xff]
    %v1183 = vld [vmem:[%s4 + $0x1a8] sm:$0xff]
    %v1184 = vld [vmem:[%s4 + $0x1b0] sm:$0xff]
    %v1185 = vld [vmem:[%s4 + $0x1b8] sm:$0xff]
    %v1186 = vld [vmem:[%s4 + $0x1c0] sm:$0xff]
    %v1187 = vld [vmem:[%s4 + $0x1c8] sm:$0xff]
    %v1188 = vld [vmem:[%s4 + $0x1d0] sm:$0xff]
    %v1189 = vld [vmem:[%s4 + $0x1d8] sm:$0xff]
    %v1190 = vld [vmem:[%s4 + $0x1e0] sm:$0xff]
    %v1191 = vld [vmem:[%s4 + $0x1e8] sm:$0xff]
    %v1192 = vld [vmem:[%s4 + $0x1f0] sm:$0xff]
    %v1193 = vld [vmem:[%s4 + $0x1f8] sm:$0xff]
    %v1194 = vld [vmem:[%s2] sm:$0x1]
    %v1196 = vperm.slane %v1194, 0
    %v1198 = vmul.f32 %v1130, %v1196
    %v1199 = vmul.f32 %v1131, %v1196
    %v1200 = vmul.f32 %v1132, %v1196
    %v1201 = vmul.f32 %v1133, %v1196
    %v1202 = vmul.f32 %v1134, %v1196
    %v1203 = vmul.f32 %v1135, %v1196
    %v1204 = vmul.f32 %v1136, %v1196
    %v1205 = vmul.f32 %v1137, %v1196
    %v1206 = vmul.f32 %v1138, %v1196
    %v1207 = vmul.f32 %v1139, %v1196
    %v1208 = vmul.f32 %v1140, %v1196
    %v1209 = vmul.f32 %v1141, %v1196
    %v1210 = vmul.f32 %v1142, %v1196
    %v1211 = vmul.f32 %v1143, %v1196
    %v1212 = vmul.f32 %v1144, %v1196
    %v1213 = vmul.f32 %v1145, %v1196
    %v1214 = vmul.f32 %v1146, %v1196
    %v1215 = vmul.f32 %v1147, %v1196
    %v1216 = vmul.f32 %v1148, %v1196
    %v1217 = vmul.f32 %v1149, %v1196
    %v1218 = vmul.f32 %v1150, %v1196
    %v1219 = vmul.f32 %v1151, %v1196
    %v1220 = vmul.f32 %v1152, %v1196
    %v1221 = vmul.f32 %v1153, %v1196
    %v1222 = vmul.f32 %v1154, %v1196
    %v1223 = vmul.f32 %v1155, %v1196
    %v1224 = vmul.f32 %v1156, %v1196
    %v1225 = vmul.f32 %v1157, %v1196
    %v1226 = vmul.f32 %v1158, %v1196
    %v1227 = vmul.f32 %v1159, %v1196
    %v1228 = vmul.f32 %v1160, %v1196
    %v1229 = vmul.f32 %v1161, %v1196
    %v1230 = vmul.f32 %v1162, %v1196
    %v1231 = vmul.f32 %v1163, %v1196
    %v1232 = vmul.f32 %v1164, %v1196
    %v1233 = vmul.f32 %v1165, %v1196
    %v1234 = vmul.f32 %v1166, %v1196
    %v1235 = vmul.f32 %v1167, %v1196
    %v1236 = vmul.f32 %v1168, %v1196
    %v1237 = vmul.f32 %v1169, %v1196
    %v1238 = vmul.f32 %v1170, %v1196
    %v1239 = vmul.f32 %v1171, %v1196
    %v1240 = vmul.f32 %v1172, %v1196
    %v1241 = vmul.f32 %v1173, %v1196
    %v1242 = vmul.f32 %v1174, %v1196
    %v1243 = vmul.f32 %v1175, %v1196
    %v1244 = vmul.f32 %v1176, %v1196
    %v1245 = vmul.f32 %v1177, %v1196
    %v1246 = vmul.f32 %v1178, %v1196
    %v1247 = vmul.f32 %v1179, %v1196
    %v1248 = vmul.f32 %v1180, %v1196
    %v1249 = vmul.f32 %v1181, %v1196
    %v1250 = vmul.f32 %v1182, %v1196
    %v1251 = vmul.f32 %v1183, %v1196
    %v1252 = vmul.f32 %v1184, %v1196
    %v1253 = vmul.f32 %v1185, %v1196
    %v1254 = vmul.f32 %v1186, %v1196
    %v1255 = vmul.f32 %v1187, %v1196
    %v1256 = vmul.f32 %v1188, %v1196
    %v1257 = vmul.f32 %v1189, %v1196
    %v1258 = vmul.f32 %v1190, %v1196
    %v1259 = vmul.f32 %v1191, %v1196
    %v1260 = vmul.f32 %v1192, %v1196
    %v1261 = vmul.f32 %v1193, %v1196
    %v1262 = vld [vmem:[%s3] sm:$0x1]
    %v1264 = vperm.slane %v1262, 0
    %v1266 = vadd.f32 %v1198, %v1264
    %v1267 = vadd.f32 %v1199, %v1264
    %v1268 = vadd.f32 %v1200, %v1264
    %v1269 = vadd.f32 %v1201, %v1264
    %v1270 = vadd.f32 %v1202, %v1264
    %v1271 = vadd.f32 %v1203, %v1264
    %v1272 = vadd.f32 %v1204, %v1264
    %v1273 = vadd.f32 %v1205, %v1264
    %v1274 = vadd.f32 %v1206, %v1264
    %v1275 = vadd.f32 %v1207, %v1264
    %v1276 = vadd.f32 %v1208, %v1264
    %v1277 = vadd.f32 %v1209, %v1264
    %v1278 = vadd.f32 %v1210, %v1264
    %v1279 = vadd.f32 %v1211, %v1264
    %v1280 = vadd.f32 %v1212, %v1264
    %v1281 = vadd.f32 %v1213, %v1264
    %v1282 = vadd.f32 %v1214, %v1264
    %v1283 = vadd.f32 %v1215, %v1264
    %v1284 = vadd.f32 %v1216, %v1264
    %v1285 = vadd.f32 %v1217, %v1264
    %v1286 = vadd.f32 %v1218, %v1264
    %v1287 = vadd.f32 %v1219, %v1264
    %v1288 = vadd.f32 %v1220, %v1264
    %v1289 = vadd.f32 %v1221, %v1264
    %v1290 = vadd.f32 %v1222, %v1264
    %v1291 = vadd.f32 %v1223, %v1264
    %v1292 = vadd.f32 %v1224, %v1264
    %v1293 = vadd.f32 %v1225, %v1264
    %v1294 = vadd.f32 %v1226, %v1264
    %v1295 = vadd.f32 %v1227, %v1264
    %v1296 = vadd.f32 %v1228, %v1264
    %v1297 = vadd.f32 %v1229, %v1264
    %v1298 = vadd.f32 %v1230, %v1264
    %v1299 = vadd.f32 %v1231, %v1264
    %v1300 = vadd.f32 %v1232, %v1264
    %v1301 = vadd.f32 %v1233, %v1264
    %v1302 = vadd.f32 %v1234, %v1264
    %v1303 = vadd.f32 %v1235, %v1264
    %v1304 = vadd.f32 %v1236, %v1264
    %v1305 = vadd.f32 %v1237, %v1264
    %v1306 = vadd.f32 %v1238, %v1264
    %v1307 = vadd.f32 %v1239, %v1264
    %v1308 = vadd.f32 %v1240, %v1264
    %v1309 = vadd.f32 %v1241, %v1264
    %v1310 = vadd.f32 %v1242, %v1264
    %v1311 = vadd.f32 %v1243, %v1264
    %v1312 = vadd.f32 %v1244, %v1264
    %v1313 = vadd.f32 %v1245, %v1264
    %v1314 = vadd.f32 %v1246, %v1264
    %v1315 = vadd.f32 %v1247, %v1264
    %v1316 = vadd.f32 %v1248, %v1264
    %v1317 = vadd.f32 %v1249, %v1264
    %v1318 = vadd.f32 %v1250, %v1264
    %v1319 = vadd.f32 %v1251, %v1264
    %v1320 = vadd.f32 %v1252, %v1264
    %v1321 = vadd.f32 %v1253, %v1264
    %v1322 = vadd.f32 %v1254, %v1264
    %v1323 = vadd.f32 %v1255, %v1264
    %v1324 = vadd.f32 %v1256, %v1264
    %v1325 = vadd.f32 %v1257, %v1264
    %v1326 = vadd.f32 %v1258, %v1264
    %v1327 = vadd.f32 %v1259, %v1264
    %v1328 = vadd.f32 %v1260, %v1264
    %v1329 = vadd.f32 %v1261, %v1264
    %v1330 = vmax.f32 %v1266, 0.0
    %v1331 = vmax.f32 %v1267, 0.0
    %v1332 = vmax.f32 %v1268, 0.0
    %v1333 = vmax.f32 %v1269, 0.0
    %v1334 = vmax.f32 %v1270, 0.0
    %v1335 = vmax.f32 %v1271, 0.0
    %v1336 = vmax.f32 %v1272, 0.0
    %v1337 = vmax.f32 %v1273, 0.0
    %v1338 = vmax.f32 %v1274, 0.0
    %v1339 = vmax.f32 %v1275, 0.0
    %v1340 = vmax.f32 %v1276, 0.0
    %v1341 = vmax.f32 %v1277, 0.0
    %v1342 = vmax.f32 %v1278, 0.0
    %v1343 = vmax.f32 %v1279, 0.0
    %v1344 = vmax.f32 %v1280, 0.0
    %v1345 = vmax.f32 %v1281, 0.0
    %v1346 = vmax.f32 %v1282, 0.0
    %v1347 = vmax.f32 %v1283, 0.0
    %v1348 = vmax.f32 %v1284, 0.0
    %v1349 = vmax.f32 %v1285, 0.0
    %v1350 = vmax.f32 %v1286, 0.0
    %v1351 = vmax.f32 %v1287, 0.0
    %v1352 = vmax.f32 %v1288, 0.0
    %v1353 = vmax.f32 %v1289, 0.0
    %v1354 = vmax.f32 %v1290, 0.0
    %v1355 = vmax.f32 %v1291, 0.0
    %v1356 = vmax.f32 %v1292, 0.0
    %v1357 = vmax.f32 %v1293, 0.0
    %v1358 = vmax.f32 %v1294, 0.0
    %v1359 = vmax.f32 %v1295, 0.0
    %v1360 = vmax.f32 %v1296, 0.0
    %v1361 = vmax.f32 %v1297, 0.0
    %v1362 = vmax.f32 %v1298, 0.0
    %v1363 = vmax.f32 %v1299, 0.0
    %v1364 = vmax.f32 %v1300, 0.0
    %v1365 = vmax.f32 %v1301, 0.0
    %v1366 = vmax.f32 %v1302, 0.0
    %v1367 = vmax.f32 %v1303, 0.0
    %v1368 = vmax.f32 %v1304, 0.0
    %v1369 = vmax.f32 %v1305, 0.0
    %v1370 = vmax.f32 %v1306, 0.0
    %v1371 = vmax.f32 %v1307, 0.0
    %v1372 = vmax.f32 %v1308, 0.0
    %v1373 = vmax.f32 %v1309, 0.0
    %v1374 = vmax.f32 %v1310, 0.0
    %v1375 = vmax.f32 %v1311, 0.0
    %v1376 = vmax.f32 %v1312, 0.0
    %v1377 = vmax.f32 %v1313, 0.0
    %v1378 = vmax.f32 %v1314, 0.0
    %v1379 = vmax.f32 %v1315, 0.0
    %v1380 = vmax.f32 %v1316, 0.0
    %v1381 = vmax.f32 %v1317, 0.0
    %v1382 = vmax.f32 %v1318, 0.0
    %v1383 = vmax.f32 %v1319, 0.0
    %v1384 = vmax.f32 %v1320, 0.0
    %v1385 = vmax.f32 %v1321, 0.0
    %v1386 = vmax.f32 %v1322, 0.0
    %v1387 = vmax.f32 %v1323, 0.0
    %v1388 = vmax.f32 %v1324, 0.0
    %v1389 = vmax.f32 %v1325, 0.0
    %v1390 = vmax.f32 %v1326, 0.0
    %v1391 = vmax.f32 %v1327, 0.0
    %v1392 = vmax.f32 %v1328, 0.0
    %v1393 = vmax.f32 %v1329, 0.0
    %1394 = vst [vmem:[%s4] sm:$0xff] %v1330
    %1395 = vst [vmem:[%s4 + $0x8] sm:$0xff] %v1331
    %1396 = vst [vmem:[%s4 + $0x10] sm:$0xff] %v1332
    %1397 = vst [vmem:[%s4 + $0x18] sm:$0xff] %v1333
    %1398 = vst [vmem:[%s4 + $0x20] sm:$0xff] %v1334
    %1399 = vst [vmem:[%s4 + $0x28] sm:$0xff] %v1335
    %1400 = vst [vmem:[%s4 + $0x30] sm:$0xff] %v1336
    %1401 = vst [vmem:[%s4 + $0x38] sm:$0xff] %v1337
    %1402 = vst [vmem:[%s4 + $0x40] sm:$0xff] %v1338
    %1403 = vst [vmem:[%s4 + $0x48] sm:$0xff] %v1339
    %1404 = vst [vmem:[%s4 + $0x50] sm:$0xff] %v1340
    %1405 = vst [vmem:[%s4 + $0x58] sm:$0xff] %v1341
    %1406 = vst [vmem:[%s4 + $0x60] sm:$0xff] %v1342
    %1407 = vst [vmem:[%s4 + $0x68] sm:$0xff] %v1343
    %1408 = vst [vmem:[%s4 + $0x70] sm:$0xff] %v1344
    %1409 = vst [vmem:[%s4 + $0x78] sm:$0xff] %v1345
    %1410 = vst [vmem:[%s4 + $0x80] sm:$0xff] %v1346
    %1411 = vst [vmem:[%s4 + $0x88] sm:$0xff] %v1347
    %1412 = vst [vmem:[%s4 + $0x90] sm:$0xff] %v1348
    %1413 = vst [vmem:[%s4 + $0x98] sm:$0xff] %v1349
    %1414 = vst [vmem:[%s4 + $0xa0] sm:$0xff] %v1350
    %1415 = vst [vmem:[%s4 + $0xa8] sm:$0xff] %v1351
    %1416 = vst [vmem:[%s4 + $0xb0] sm:$0xff] %v1352
    %1417 = vst [vmem:[%s4 + $0xb8] sm:$0xff] %v1353
    %1418 = vst [vmem:[%s4 + $0xc0] sm:$0xff] %v1354
    %1419 = vst [vmem:[%s4 + $0xc8] sm:$0xff] %v1355
    %1420 = vst [vmem:[%s4 + $0xd0] sm:$0xff] %v1356
    %1421 = vst [vmem:[%s4 + $0xd8] sm:$0xff] %v1357
    %1422 = vst [vmem:[%s4 + $0xe0] sm:$0xff] %v1358
    %1423 = vst [vmem:[%s4 + $0xe8] sm:$0xff] %v1359
    %1424 = vst [vmem:[%s4 + $0xf0] sm:$0xff] %v1360
    %1425 = vst [vmem:[%s4 + $0xf8] sm:$0xff] %v1361
    %1426 = vst [vmem:[%s4 + $0x100] sm:$0xff] %v1362
    %1427 = vst [vmem:[%s4 + $0x108] sm:$0xff] %v1363
    %1428 = vst [vmem:[%s4 + $0x110] sm:$0xff] %v1364
    %1429 = vst [vmem:[%s4 + $0x118] sm:$0xff] %v1365
    %1430 = vst [vmem:[%s4 + $0x120] sm:$0xff] %v1366
    %1431 = vst [vmem:[%s4 + $0x128] sm:$0xff] %v1367
    %1432 = vst [vmem:[%s4 + $0x130] sm:$0xff] %v1368
    %1433 = vst [vmem:[%s4 + $0x138] sm:$0xff] %v1369
    %1434 = vst [vmem:[%s4 + $0x140] sm:$0xff] %v1370
    %1435 = vst [vmem:[%s4 + $0x148] sm:$0xff] %v1371
    %1436 = vst [vmem:[%s4 + $0x150] sm:$0xff] %v1372
    %1437 = vst [vmem:[%s4 + $0x158] sm:$0xff] %v1373
    %1438 = vst [vmem:[%s4 + $0x160] sm:$0xff] %v1374
    %1439 = vst [vmem:[%s4 + $0x168] sm:$0xff] %v1375
    %1440 = vst [vmem:[%s4 + $0x170] sm:$0xff] %v1376
    %1441 = vst [vmem:[%s4 + $0x178] sm:$0xff] %v1377
    %1442 = vst [vmem:[%s4 + $0x180] sm:$0xff] %v1378
    %1443 = vst [vmem:[%s4 + $0x188] sm:$0xff] %v1379
    %1444 = vst [vmem:[%s4 + $0x190] sm:$0xff] %v1380
    %1445 = vst [vmem:[%s4 + $0x198] sm:$0xff] %v1381
    %1446 = vst [vmem:[%s4 + $0x1a0] sm:$0xff] %v1382
    %1447 = vst [vmem:[%s4 + $0x1a8] sm:$0xff] %v1383
    %1448 = vst [vmem:[%s4 + $0x1b0] sm:$0xff] %v1384
    %1449 = vst [vmem:[%s4 + $0x1b8] sm:$0xff] %v1385
    %1450 = vst [vmem:[%s4 + $0x1c0] sm:$0xff] %v1386
    %1451 = vst [vmem:[%s4 + $0x1c8] sm:$0xff] %v1387
    %1452 = vst [vmem:[%s4 + $0x1d0] sm:$0xff] %v1388
    %1453 = vst [vmem:[%s4 + $0x1d8] sm:$0xff] %v1389
    %1454 = vst [vmem:[%s4 + $0x1e0] sm:$0xff] %v1390
    %1455 = vst [vmem:[%s4 + $0x1e8] sm:$0xff] %v1391
    %1456 = vst [vmem:[%s4 + $0x1f0] sm:$0xff] %v1392
    %1457 = vst [vmem:[%s4 + $0x1f8] sm:$0xff] %v1393
  $region25: #{matmul_bn_act.1} parent=0 // pred_fallthru
    _
  // Predicated region
  $region26: #{matmul_bn_act.1} parent=0 // pred_check
    _
  $region27: #{matmul_bn_act.1} parent=0 // pred_check_branch
    %1459 = sbr.rel (0) target = $region29
  $region28: #{matmul_bn_act.1} parent=0 // pred_region
    _
  $region29: #{matmul_bn_act.1} parent=0 // pred_fallthru
    _
  // Predicated region
  $region30: #{matmul_bn_act.1} parent=0 // pred_check
    _
  $region31: #{matmul_bn_act.1} parent=0 // pred_check_branch
    %1461 = sbr.rel (0) target = $region33
  $region32: #{matmul_bn_act.1} parent=0 // pred_region
    _
  $region33: #{matmul_bn_act.1} parent=0 // pred_fallthru
    _

</llo_original>
